<compile_context>
chip_gen: v5e
topology: v5e:2x2
jax: 0.10.0
libtpu: 0.0.40
codegen_flags: <defaults>
</compile_context>

<pallas_src>
import numpy as np
import jax
import jax.numpy as jnp
from jax import lax
from jax.experimental import pallas as pl
from jax.experimental.pallas import tpu as pltpu


# ------------------------------ fused kernel --------------------------------

def _bottleneck_kernel(
    # inputs
    x_tile_ref,    # (1, Th, W, Cin)   f32 pipelined NHWC tile (also residual)
    halo_ref,      # (1, 1, 2*W, Cin)  f32 pipelined top/bottom halo rows of x
    w1_ref,        # (Cin, P)    bf16  conv1 1x1 weight, BN1 folded in
    b1_ref,        # (1, P)      f32   BN1 bias
    w2_ref,        # (3, 3P, P)  bf16  conv2 3x3 [ky, kx*C, O], BN2 folded in
    b2_ref,        # (1, P)      f32
    w3_ref,        # (P, Cout)   bf16  conv3 1x1 weight, BN3 folded in
    b3_ref,        # (1, Cout)   f32
    # output
    o_ref,         # (1, Th, W, Cout)  f32
):
    t = pl.program_id(1)
    num_t = pl.num_programs(1)

    _, Th, W, Cin = x_tile_ref.shape
    P = w1_ref.shape[1]
    Cout = w3_ref.shape[1]
    MW = Th * W
    rows = (Th + 2) * W           # padded-row slab length (flattened)

    w1 = w1_ref[...]
    b1 = b1_ref[...]

    # ---- stage 1: 1x1 conv (+folded BN) + ReLU, interior + halo rows --------
    xf = x_tile_ref[...].reshape(MW, Cin)          # f32; reused as the residual
    o1_int = jnp.maximum(
        jnp.dot(xf.astype(jnp.bfloat16), w1,
                preferred_element_type=jnp.float32) + b1, 0.0)

    halo = halo_ref[...].reshape(2 * W, Cin)
    o1_halo = jnp.maximum(
        jnp.dot(halo.astype(jnp.bfloat16), w1,
                preferred_element_type=jnp.float32) + b1, 0.0)

    # conv2's zero padding applies to the *stage-1 output*: zero halo rows that
    # fall outside the image (valid because conv1 is pointwise).
    top_valid = (t > 0).astype(jnp.float32)
    bot_valid = (t < num_t - 1).astype(jnp.float32)
    # Flattened padded slab: row index r*W + w  <->  (padded row r, column w).
    slab = jnp.concatenate(
        [o1_halo[:W] * top_valid, o1_int, o1_halo[W:] * bot_valid], axis=0)

    # ---- stage 2: 3x3 conv (pad=1) as im2col over kx: 3 matmuls with K=3P ---
    wcol = lax.broadcasted_iota(jnp.int32, (rows, 1), 0) % W
    mask_l = (wcol != 0).astype(jnp.float32)       # tap reads column w-1
    mask_r = (wcol != W - 1).astype(jnp.float32)   # tap reads column w+1
    zrow = jnp.zeros((1, P), jnp.float32)
    left = jnp.concatenate([zrow, slab[:-1]], axis=0) * mask_l
    right = jnp.concatenate([slab[1:], zrow], axis=0) * mask_r
    wide = jnp.concatenate([left, slab, right], axis=1)       # (rows, 3P) f32

    acc = jnp.dot(wide[0:MW].astype(jnp.bfloat16), w2_ref[0],
                  preferred_element_type=jnp.float32)
    acc = acc + jnp.dot(wide[W:W + MW].astype(jnp.bfloat16), w2_ref[1],
                        preferred_element_type=jnp.float32)
    acc = acc + jnp.dot(wide[2 * W:2 * W + MW].astype(jnp.bfloat16), w2_ref[2],
                        preferred_element_type=jnp.float32)
    o2 = jnp.maximum(acc + b2_ref[...], 0.0)

    # ---- stage 3: 1x1 conv + folded BN + residual add + ReLU ----------------
    y = jnp.dot(o2.astype(jnp.bfloat16), w3_ref[...],
                preferred_element_type=jnp.float32) + b3_ref[...] + xf
    o_ref[...] = jnp.maximum(y, 0.0).reshape(1, Th, W, Cout).astype(o_ref.dtype)


# ------------------------- tile / VMEM budgeting -----------------------------

def _vmem_capacity_bytes():
    """Physical VMEM of the local TPU generation (fallback: 64 MiB = v7x)."""
    try:
        info = pltpu.get_tpu_info()
        cap = getattr(info, "vmem_capacity_bytes", None)
        if cap:
            return int(max(min(int(cap), 256 << 20), 32 << 20))
    except Exception:
        pass
    return 64 * 1024 * 1024


def _tile_vmem_bytes(th, W, Cin, P, Cout):
    """Rough per-grid-step VMEM estimate (double-buffered I/O + live values)."""
    rows = (th + 2) * W
    mw = th * W
    b = 2 * mw * Cin * 4            # x tile (double buffered)
    b += 2 * mw * Cout * 4          # out tile (double buffered)
    b += 2 * 2 * W * Cin * 4        # halo rows (double buffered)
    b += mw * Cin * 4               # residual value
    b += 3 * rows * P * 4           # slab + left + right (f32)
    b += rows * 3 * P * 4           # wide (f32)
    b += mw * 3 * P * 2             # bf16 matmul patch
    b += 2 * mw * P * 4             # acc + o2
    b += mw * Cout * 4              # y
    b += 2 * (Cin * P + 9 * P * P + P * Cout)    # bf16 weights
    b += 4 * (2 * P + Cout)                      # biases
    return b


def _pick_row_tile(N, H, W, Cin, P, Cout, budget_bytes):
    """Largest divisor of H whose per-step footprint fits the VMEM budget,
    preferring >=2 total grid steps so both v7x TensorCores get work."""
    divisors = sorted((d for d in range(1, H + 1) if H % d == 0), reverse=True)
    fitting = [d for d in divisors
               if _tile_vmem_bytes(d, W, Cin, P, Cout) <= budget_bytes]
    if not fitting:
        return 1
    multi = [d for d in fitting if N * (H // d) >= 2]
    return multi[0] if multi else fitting[0]


# --------------------------------- wrapper ----------------------------------

def fold_bn_into_conv(w, bn, eps=1e-5):
    """Fold eval-mode BatchNorm into a conv weight whose LAST dim is Cout."""
    gamma, beta, mean, var = bn
    scale = gamma / jnp.sqrt(var + eps)
    return w * scale, (beta - mean * scale)[None, :]


def prepare_params(raw, eps=1e-5):
    """PyTorch OIHW weights + BN running stats -> folded kernel-layout params."""
    w1_oihw, w2_oihw, w3_oihw = raw['w1_oihw'], raw['w2_oihw'], raw['w3_oihw']
    planes = w2_oihw.shape[0]
    w1 = jnp.transpose(w1_oihw[:, :, 0, 0], (1, 0))          # (Cin, P)
    w2 = jnp.transpose(w2_oihw, (2, 3, 1, 0))                # (ky, kx, Cin, O)
    w3 = jnp.transpose(w3_oihw[:, :, 0, 0], (1, 0))          # (P, 4P)
    w1f, b1 = fold_bn_into_conv(w1, raw['bn1'], eps)
    w2f, b2 = fold_bn_into_conv(w2, raw['bn2'], eps)
    w3f, b3 = fold_bn_into_conv(w3, raw['bn3'], eps)
    # conv2 weights laid out for the im2col matmuls: (ky, kx*Cin, Cout) — the
    # kernel's `wide` activation is [x(w-1) | x(w) | x(w+1)] along channels.
    w2f = w2f.reshape(3, 3 * planes, planes)
    return (w1f.astype(jnp.bfloat16), b1.astype(jnp.float32),
            w2f.astype(jnp.bfloat16), b2.astype(jnp.float32),
            w3f.astype(jnp.bfloat16), b3.astype(jnp.float32))


def bottleneck_forward_nhwc(x_nhwc, params):
    w1, b1, w2, b2, w3, b3 = params
    N, H, W, Cin = x_nhwc.shape
    P = w1.shape[1]
    Cout = w3.shape[1]
    assert Cout == Cin, "downsample=None requires inplanes == planes*expansion"
    assert w1.shape[0] == Cin and w2.shape == (3, 3 * P, P) and w3.shape[0] == P
    assert W % 8 == 0, "W must be a multiple of 8 (sublane alignment)"

    vmem_cap = _vmem_capacity_bytes()
    vmem_limit = max(32 << 20, min(int(vmem_cap * 0.85), vmem_cap - (4 << 20)))
    Th = _pick_row_tile(N, H, W, Cin, P, Cout,
                        budget_bytes=int(vmem_limit * 0.8))
    T = H // Th

    # Halo rows (row above / below each tile), clamped at the image border; the
    # kernel zeroes the out-of-image ones.  Fetched through the normal BlockSpec
    # pipeline, so there are no in-body DMAs.
    t_idx = np.arange(T)
    top_rows = np.clip(t_idx * Th - 1, 0, H - 1)
    bot_rows = np.clip((t_idx + 1) * Th, 0, H - 1)
    halo = jnp.stack([x_nhwc[:, top_rows], x_nhwc[:, bot_rows]], axis=2)
    halo = halo.reshape(N, T, 2 * W, Cin)

    flops = 2 * N * H * W * (Cin * P + 9 * P * P + P * Cout)
    bytes_accessed = (4 * N * H * W * (Cin + Cout)
                      + 4 * N * T * 2 * W * Cin
                      + 2 * (w1.size + w2.size + w3.size)
                      + 4 * (b1.size + b2.size + b3.size))

    return pl.pallas_call(
        _bottleneck_kernel,
        out_shape=jax.ShapeDtypeStruct((N, H, W, Cout), jnp.float32),
        grid=(N, T),
        in_specs=[
            pl.BlockSpec((1, Th, W, Cin), lambda n, t: (n, t, 0, 0)),
            pl.BlockSpec((1, 1, 2 * W, Cin), lambda n, t: (n, t, 0, 0)),
            pl.BlockSpec((Cin, P), lambda n, t: (0, 0)),
            pl.BlockSpec((1, P), lambda n, t: (0, 0)),
            pl.BlockSpec((3, 3 * P, P), lambda n, t: (0, 0, 0)),
            pl.BlockSpec((1, P), lambda n, t: (0, 0)),
            pl.BlockSpec((P, Cout), lambda n, t: (0, 0)),
            pl.BlockSpec((1, Cout), lambda n, t: (0, 0)),
        ],
        out_specs=pl.BlockSpec((1, Th, W, Cout), lambda n, t: (n, t, 0, 0)),
        compiler_params=pltpu.CompilerParams(
            dimension_semantics=("parallel", "parallel"),
            vmem_limit_bytes=int(vmem_limit)),
        cost_estimate=pl.CostEstimate(
            flops=int(flops), transcendentals=0,
            bytes_accessed=int(bytes_accessed)),
    )(x_nhwc, halo, w1, b1, w2, b2, w3, b3)


def bottleneck_forward(x_nchw, params):
    """NCHW in/out to match nn.Conv2d; internally NHWC (channels on lanes)."""
    # TODO(synk): keep the surrounding model NHWC to drop these two transposes.
    x = jnp.transpose(x_nchw, (0, 2, 3, 1))
    out = bottleneck_forward_nhwc(x, params)
    return jnp.transpose(out, (0, 3, 1, 2))


# --------------------------- pure-JAX reference ------------------------------

def bottleneck_ref(x, raw):
    def conv(x, w, pad=0):
        return lax.conv_general_dilated(
            x, w, (1, 1), [(pad, pad), (pad, pad)],
            dimension_numbers=('NCHW', 'OIHW', 'NCHW'))

    def bn(x, bnp):
        g, b, m, v = bnp
        inv = g / jnp.sqrt(v + 1e-5)
        return (x - m[None, :, None, None]) * inv[None, :, None, None] \
            + b[None, :, None, None]

    out = jax.nn.relu(bn(conv(x, raw['w1_oihw']), raw['bn1']))
    out = jax.nn.relu(bn(conv(out, raw['w2_oihw'], pad=1), raw['bn2']))
    out = bn(conv(out, raw['w3_oihw']), raw['bn3'])
    return jax.nn.relu(out + x)


# ------------------------------------ main -----------------------------------

if __name__ == "__main__":
    # Small shapes: inplanes=16, planes=4 (expansion=4 -> out=16), N=2, 16x16.
    inplanes, planes, N, H, W = 16, 4, 2, 16, 16

    key = jax.random.PRNGKey(0)
    ks = jax.random.split(key, 8)

    def bn_params(k, c):
        k1, k2, k3, k4 = jax.random.split(k, 4)
        gamma = jax.random.uniform(k1, (c,), jnp.float32, 0.5, 1.5)
        beta = jax.random.normal(k2, (c,), jnp.float32) * 0.1
        mean = jax.random.normal(k3, (c,), jnp.float32) * 0.1
        var = jax.random.uniform(k4, (c,), jnp.float32, 0.5, 1.5)
        return (gamma, beta, mean, var)

    raw = {
        'w1_oihw': jax.random.normal(ks[0], (planes, inplanes, 1, 1), jnp.float32) * 0.1,
        'w2_oihw': jax.random.normal(ks[1], (planes, planes, 3, 3), jnp.float32) * 0.1,
        'w3_oihw': jax.random.normal(ks[2], (planes * 4, planes, 1, 1), jnp.float32) * 0.1,
        'bn1': bn_params(ks[3], planes),
        'bn2': bn_params(ks[4], planes),
        'bn3': bn_params(ks[5], planes * 4),
    }
    x = jax.random.normal(ks[6], (N, inplanes, H, W), jnp.float32)

    params = prepare_params(raw)

    out = jax.block_until_ready(bottleneck_forward(x, params))
    ref = jax.block_until_ready(bottleneck_ref(x, raw))

    # bf16 MXU inputs (f32 accumulate/epilogue) -> loosened tolerance.
    np.testing.assert_allclose(np.asarray(out), np.asarray(ref),
                               rtol=3e-2, atol=3e-2)
    print("KERNEL_OK")
</pallas_src>

<mosaic_0001>
module attributes {stable_mosaic.version = 11 : i64} {
  func.func @_bottleneck_kernel(%arg0: i32, %arg1: i32, %arg2: memref<1x16x16x16xf32, #tpu.memory_space<vmem>>, %arg3: memref<1x1x32x16xf32, #tpu.memory_space<vmem>>, %arg4: memref<16x4xbf16, #tpu.memory_space<vmem>>, %arg5: memref<1x4xf32, #tpu.memory_space<vmem>>, %arg6: memref<3x12x4xbf16, #tpu.memory_space<vmem>>, %arg7: memref<1x4xf32, #tpu.memory_space<vmem>>, %arg8: memref<4x16xbf16, #tpu.memory_space<vmem>>, %arg9: memref<1x16xf32, #tpu.memory_space<vmem>>, %arg10: memref<1x16x16x16xf32, #tpu.memory_space<vmem>>) attributes {dimension_semantics = [#tpu.dimension_semantics<parallel>, #tpu.dimension_semantics<parallel>], iteration_bounds = array<i64: 2, 1>, scalar_prefetch = 0 : i64, scratch_operands = 0 : i64, tpu.core_type = #tpu.core_type<tc>, window_params = [{transform_indices = @transform_0, window_bounds = array<i64: 1, 16, 16, 16>}, {transform_indices = @transform_1, window_bounds = array<i64: 1, 1, 32, 16>}, {pipeline_mode = #tpu.pipeline_mode<synchronous>, transform_indices = @transform_2, window_bounds = array<i64: 16, 4>}, {pipeline_mode = #tpu.pipeline_mode<synchronous>, transform_indices = @transform_3, window_bounds = array<i64: 1, 4>}, {pipeline_mode = #tpu.pipeline_mode<synchronous>, transform_indices = @transform_4, window_bounds = array<i64: 3, 12, 4>}, {pipeline_mode = #tpu.pipeline_mode<synchronous>, transform_indices = @transform_5, window_bounds = array<i64: 1, 4>}, {pipeline_mode = #tpu.pipeline_mode<synchronous>, transform_indices = @transform_6, window_bounds = array<i64: 4, 16>}, {pipeline_mode = #tpu.pipeline_mode<synchronous>, transform_indices = @transform_7, window_bounds = array<i64: 1, 16>}, {transform_indices = @transform_8, window_bounds = array<i64: 1, 16, 16, 16>}]} {
    %c0 = arith.constant 0 : index
    %c0_0 = arith.constant 0 : index
    %0 = vector.load %arg4[%c0, %c0_0] : memref<16x4xbf16, #tpu.memory_space<vmem>>, vector<16x4xbf16>
    %c0_1 = arith.constant 0 : index
    %c0_2 = arith.constant 0 : index
    %1 = vector.load %arg5[%c0_1, %c0_2] : memref<1x4xf32, #tpu.memory_space<vmem>>, vector<1x4xf32>
    %c0_3 = arith.constant 0 : index
    %c0_4 = arith.constant 0 : index
    %c0_5 = arith.constant 0 : index
    %c0_6 = arith.constant 0 : index
    %2 = vector.load %arg2[%c0_3, %c0_4, %c0_5, %c0_6] : memref<1x16x16x16xf32, #tpu.memory_space<vmem>>, vector<1x16x16x16xf32>
    %3 = vector.shape_cast %2 : vector<1x16x16x16xf32> to vector<256x16xf32>
    %4 = arith.truncf %3 : vector<256x16xf32> to vector<256x16xbf16>
    %cst = arith.constant dense<0.000000e+00> : vector<256x4xf32>
    %5 = tpu.matmul %4, %0, %cst {dimension_numbers = #tpu.dot_dimension_numbers<[1], [0], [0], [1], [0, 0, 1, 1], [], []>} : vector<256x16xbf16>, vector<16x4xbf16>, vector<256x4xf32> -> vector<256x4xf32>
    %6 = vector.broadcast %1 : vector<1x4xf32> to vector<256x4xf32>
    %7 = arith.addf %5, %6 : vector<256x4xf32>
    %cst_7 = arith.constant 0.000000e+00 : f32
    %8 = vector.broadcast %cst_7 : f32 to vector<256x4xf32>
    %9 = arith.maximumf %7, %8 : vector<256x4xf32>
    %c0_8 = arith.constant 0 : index
    %c0_9 = arith.constant 0 : index
    %c0_10 = arith.constant 0 : index
    %c0_11 = arith.constant 0 : index
    %10 = vector.load %arg3[%c0_8, %c0_9, %c0_10, %c0_11] : memref<1x1x32x16xf32, #tpu.memory_space<vmem>>, vector<1x1x32x16xf32>
    %11 = vector.shape_cast %10 : vector<1x1x32x16xf32> to vector<32x16xf32>
    %12 = arith.truncf %11 : vector<32x16xf32> to vector<32x16xbf16>
    %cst_12 = arith.constant dense<0.000000e+00> : vector<32x4xf32>
    %13 = tpu.matmul %12, %0, %cst_12 {dimension_numbers = #tpu.dot_dimension_numbers<[1], [0], [0], [1], [0, 0, 1, 1], [], []>} : vector<32x16xbf16>, vector<16x4xbf16>, vector<32x4xf32> -> vector<32x4xf32>
    %14 = vector.broadcast %1 : vector<1x4xf32> to vector<32x4xf32>
    %15 = arith.addf %13, %14 : vector<32x4xf32>
    %cst_13 = arith.constant 0.000000e+00 : f32
    %16 = vector.broadcast %cst_13 : f32 to vector<32x4xf32>
    %17 = arith.maximumf %15, %16 : vector<32x4xf32>
    %c0_i32 = arith.constant 0 : i32
    %18 = arith.cmpi sgt, %arg1, %c0_i32 : i32
    %19 = arith.extui %18 : i1 to i32
    %20 = arith.sitofp %19 : i32 to f32
    %c0_i32_14 = arith.constant 0 : i32
    %21 = arith.cmpi slt, %arg1, %c0_i32_14 : i32
    %22 = arith.extui %21 : i1 to i32
    %23 = arith.sitofp %22 : i32 to f32
    %24 = vector.extract_strided_slice %17 {offsets = [0, 0], sizes = [16, 4], strides = [1, 1]} : vector<32x4xf32> to vector<16x4xf32>
    %25 = vector.broadcast %20 : f32 to vector<16x4xf32>
    %26 = arith.mulf %24, %25 : vector<16x4xf32>
    %27 = vector.extract_strided_slice %17 {offsets = [16, 0], sizes = [16, 4], strides = [1, 1]} : vector<32x4xf32> to vector<16x4xf32>
    %28 = vector.broadcast %23 : f32 to vector<16x4xf32>
    %29 = arith.mulf %27, %28 : vector<16x4xf32>
    %30 = tpu.concatenate %26, %9, %29 in 0 : vector<16x4xf32>, vector<256x4xf32>, vector<16x4xf32> -> vector<288x4xf32>
    %31 = tpu.iota {dimensions = array<i32: 0>} : vector<288x1xi32>
    %c16_i32 = arith.constant 16 : i32
    %c0_i32_15 = arith.constant 0 : i32
    %32 = arith.cmpi eq, %c16_i32, %c0_i32_15 : i32
    %c1_i32 = arith.constant 1 : i32
    %33 = arith.select %32, %c1_i32, %c16_i32 : i32
    %34 = vector.broadcast %33 : i32 to vector<288x1xi32>
    %35 = arith.remsi %31, %34 : vector<288x1xi32>
    %c0_i32_16 = arith.constant 0 : i32
    %36 = vector.broadcast %c0_i32_16 : i32 to vector<288x1xi32>
    %37 = arith.cmpi ne, %35, %36 : vector<288x1xi32>
    %c0_i32_17 = arith.constant 0 : i32
    %38 = vector.broadcast %c0_i32_17 : i32 to vector<288x1xi32>
    %39 = arith.cmpi slt, %35, %38 : vector<288x1xi32>
    %c0_i32_18 = arith.constant 0 : i32
    %40 = arith.cmpi slt, %33, %c0_i32_18 : i32
    %41 = vector.broadcast %40 : i1 to vector<288x1xi1>
    %42 = vector.broadcast %41 : vector<288x1xi1> to vector<288x1xi1>
    %43 = arith.xori %39, %42 : vector<288x1xi1>
    %44 = arith.andi %43, %37 : vector<288x1xi1>
    %45 = vector.broadcast %33 : i32 to vector<288x1xi32>
    %46 = arith.addi %35, %45 : vector<288x1xi32>
    %47 = arith.select %44, %46, %35 : vector<288x1xi1>, vector<288x1xi32>
    %c0_i32_19 = arith.constant 0 : i32
    %48 = vector.broadcast %c0_i32_19 : i32 to vector<288x1xi32>
    %49 = arith.cmpi ne, %47, %48 : vector<288x1xi32>
    %50 = arith.extui %49 : vector<288x1xi1> to vector<288x1xi32>
    %51 = arith.sitofp %50 : vector<288x1xi32> to vector<288x1xf32>
    %c15_i32 = arith.constant 15 : i32
    %52 = vector.broadcast %c15_i32 : i32 to vector<288x1xi32>
    %53 = arith.cmpi ne, %47, %52 : vector<288x1xi32>
    %54 = arith.extui %53 : vector<288x1xi1> to vector<288x1xi32>
    %55 = arith.sitofp %54 : vector<288x1xi32> to vector<288x1xf32>
    %cst_20 = arith.constant 0.000000e+00 : f32
    %56 = vector.broadcast %cst_20 : f32 to vector<1x4xf32>
    %57 = vector.extract_strided_slice %30 {offsets = [0, 0], sizes = [287, 4], strides = [1, 1]} : vector<288x4xf32> to vector<287x4xf32>
    %58 = tpu.concatenate %56, %57 in 0 : vector<1x4xf32>, vector<287x4xf32> -> vector<288x4xf32>
    %59 = vector.broadcast %51 : vector<288x1xf32> to vector<288x4xf32>
    %60 = arith.mulf %58, %59 : vector<288x4xf32>
    %61 = vector.extract_strided_slice %30 {offsets = [1, 0], sizes = [287, 4], strides = [1, 1]} : vector<288x4xf32> to vector<287x4xf32>
    %62 = tpu.concatenate %61, %56 in 0 : vector<287x4xf32>, vector<1x4xf32> -> vector<288x4xf32>
    %63 = vector.broadcast %55 : vector<288x1xf32> to vector<288x4xf32>
    %64 = arith.mulf %62, %63 : vector<288x4xf32>
    %65 = tpu.concatenate %60, %30, %64 in 1 : vector<288x4xf32>, vector<288x4xf32>, vector<288x4xf32> -> vector<288x12xf32>
    %66 = vector.extract_strided_slice %65 {offsets = [0, 0], sizes = [256, 12], strides = [1, 1]} : vector<288x12xf32> to vector<256x12xf32>
    %67 = arith.truncf %66 : vector<256x12xf32> to vector<256x12xbf16>
    %c0_21 = arith.constant 0 : index
    %c0_22 = arith.constant 0 : index
    %c0_23 = arith.constant 0 : index
    %68 = vector.load %arg6[%c0_21, %c0_22, %c0_23] : memref<3x12x4xbf16, #tpu.memory_space<vmem>>, vector<1x12x4xbf16>
    %69 = vector.shape_cast %68 : vector<1x12x4xbf16> to vector<12x4xbf16>
    %cst_24 = arith.constant dense<0.000000e+00> : vector<256x4xf32>
    %70 = tpu.matmul %67, %69, %cst_24 {dimension_numbers = #tpu.dot_dimension_numbers<[1], [0], [0], [1], [0, 0, 1, 1], [], []>} : vector<256x12xbf16>, vector<12x4xbf16>, vector<256x4xf32> -> vector<256x4xf32>
    %71 = vector.extract_strided_slice %65 {offsets = [16, 0], sizes = [256, 12], strides = [1, 1]} : vector<288x12xf32> to vector<256x12xf32>
    %72 = arith.truncf %71 : vector<256x12xf32> to vector<256x12xbf16>
    %c1 = arith.constant 1 : index
    %c0_25 = arith.constant 0 : index
    %c0_26 = arith.constant 0 : index
    %73 = vector.load %arg6[%c1, %c0_25, %c0_26] : memref<3x12x4xbf16, #tpu.memory_space<vmem>>, vector<1x12x4xbf16>
    %74 = vector.shape_cast %73 : vector<1x12x4xbf16> to vector<12x4xbf16>
    %cst_27 = arith.constant dense<0.000000e+00> : vector<256x4xf32>
    %75 = tpu.matmul %72, %74, %cst_27 {dimension_numbers = #tpu.dot_dimension_numbers<[1], [0], [0], [1], [0, 0, 1, 1], [], []>} : vector<256x12xbf16>, vector<12x4xbf16>, vector<256x4xf32> -> vector<256x4xf32>
    %76 = arith.addf %70, %75 : vector<256x4xf32>
    %77 = vector.extract_strided_slice %65 {offsets = [32, 0], sizes = [256, 12], strides = [1, 1]} : vector<288x12xf32> to vector<256x12xf32>
    %78 = arith.truncf %77 : vector<256x12xf32> to vector<256x12xbf16>
    %c2 = arith.constant 2 : index
    %c0_28 = arith.constant 0 : index
    %c0_29 = arith.constant 0 : index
    %79 = vector.load %arg6[%c2, %c0_28, %c0_29] : memref<3x12x4xbf16, #tpu.memory_space<vmem>>, vector<1x12x4xbf16>
    %80 = vector.shape_cast %79 : vector<1x12x4xbf16> to vector<12x4xbf16>
    %cst_30 = arith.constant dense<0.000000e+00> : vector<256x4xf32>
    %81 = tpu.matmul %78, %80, %cst_30 {dimension_numbers = #tpu.dot_dimension_numbers<[1], [0], [0], [1], [0, 0, 1, 1], [], []>} : vector<256x12xbf16>, vector<12x4xbf16>, vector<256x4xf32> -> vector<256x4xf32>
    %82 = arith.addf %76, %81 : vector<256x4xf32>
    %c0_31 = arith.constant 0 : index
    %c0_32 = arith.constant 0 : index
    %83 = vector.load %arg7[%c0_31, %c0_32] : memref<1x4xf32, #tpu.memory_space<vmem>>, vector<1x4xf32>
    %84 = vector.broadcast %83 : vector<1x4xf32> to vector<256x4xf32>
    %85 = arith.addf %82, %84 : vector<256x4xf32>
    %cst_33 = arith.constant 0.000000e+00 : f32
    %86 = vector.broadcast %cst_33 : f32 to vector<256x4xf32>
    %87 = arith.maximumf %85, %86 : vector<256x4xf32>
    %88 = arith.truncf %87 : vector<256x4xf32> to vector<256x4xbf16>
    %c0_34 = arith.constant 0 : index
    %c0_35 = arith.constant 0 : index
    %89 = vector.load %arg8[%c0_34, %c0_35] : memref<4x16xbf16, #tpu.memory_space<vmem>>, vector<4x16xbf16>
    %cst_36 = arith.constant dense<0.000000e+00> : vector<256x16xf32>
    %90 = tpu.matmul %88, %89, %cst_36 {dimension_numbers = #tpu.dot_dimension_numbers<[1], [0], [0], [1], [0, 0, 1, 1], [], []>} : vector<256x4xbf16>, vector<4x16xbf16>, vector<256x16xf32> -> vector<256x16xf32>
    %c0_37 = arith.constant 0 : index
    %c0_38 = arith.constant 0 : index
    %91 = vector.load %arg9[%c0_37, %c0_38] : memref<1x16xf32, #tpu.memory_space<vmem>>, vector<1x16xf32>
    %92 = vector.broadcast %91 : vector<1x16xf32> to vector<256x16xf32>
    %93 = arith.addf %90, %92 : vector<256x16xf32>
    %94 = arith.addf %93, %3 : vector<256x16xf32>
    %cst_39 = arith.constant 0.000000e+00 : f32
    %95 = vector.broadcast %cst_39 : f32 to vector<256x16xf32>
    %96 = arith.maximumf %94, %95 : vector<256x16xf32>
    %97 = vector.shape_cast %96 : vector<256x16xf32> to vector<1x16x16x16xf32>
    %c0_40 = arith.constant 0 : index
    %c0_41 = arith.constant 0 : index
    %c0_42 = arith.constant 0 : index
    %c0_43 = arith.constant 0 : index
    %98 = vector.load %arg10[%c0_40, %c0_41, %c0_42, %c0_43] : memref<1x16x16x16xf32, #tpu.memory_space<vmem>>, vector<1x16x16x16xf32>
    tpu.vector_store %arg10[%c0_40, %c0_41, %c0_42, %c0_43], %97 {strides = array<i32>} : memref<1x16x16x16xf32, #tpu.memory_space<vmem>>, vector<1x16x16x16xf32>,
    return
  }
  func.func @transform_0(%arg0: i32, %arg1: i32) -> (i32, i32, i32, i32) {
    %c0_i32 = arith.constant 0 : i32
    %c0_i32_0 = arith.constant 0 : i32
    %c0_i32_1 = arith.constant 0 : i32
    return %arg0, %arg1, %c0_i32, %c0_i32_0 : i32, i32, i32, i32
  }
  func.func @transform_1(%arg0: i32, %arg1: i32) -> (i32, i32, i32, i32) {
    %c0_i32 = arith.constant 0 : i32
    %c0_i32_0 = arith.constant 0 : i32
    %c0_i32_1 = arith.constant 0 : i32
    return %arg0, %arg1, %c0_i32, %c0_i32_0 : i32, i32, i32, i32
  }
  func.func @transform_2(%arg0: i32, %arg1: i32) -> (i32, i32) {
    %c0_i32 = arith.constant 0 : i32
    %c0_i32_0 = arith.constant 0 : i32
    %c0_i32_1 = arith.constant 0 : i32
    return %c0_i32, %c0_i32_0 : i32, i32
  }
  func.func @transform_3(%arg0: i32, %arg1: i32) -> (i32, i32) {
    %c0_i32 = arith.constant 0 : i32
    %c0_i32_0 = arith.constant 0 : i32
    %c0_i32_1 = arith.constant 0 : i32
    return %c0_i32, %c0_i32_0 : i32, i32
  }
  func.func @transform_4(%arg0: i32, %arg1: i32) -> (i32, i32, i32) {
    %c0_i32 = arith.constant 0 : i32
    %c0_i32_0 = arith.constant 0 : i32
    %c0_i32_1 = arith.constant 0 : i32
    %c0_i32_2 = arith.constant 0 : i32
    return %c0_i32, %c0_i32_0, %c0_i32_1 : i32, i32, i32
  }
  func.func @transform_5(%arg0: i32, %arg1: i32) -> (i32, i32) {
    %c0_i32 = arith.constant 0 : i32
    %c0_i32_0 = arith.constant 0 : i32
    %c0_i32_1 = arith.constant 0 : i32
    return %c0_i32, %c0_i32_0 : i32, i32
  }
  func.func @transform_6(%arg0: i32, %arg1: i32) -> (i32, i32) {
    %c0_i32 = arith.constant 0 : i32
    %c0_i32_0 = arith.constant 0 : i32
    %c0_i32_1 = arith.constant 0 : i32
    return %c0_i32, %c0_i32_0 : i32, i32
  }
  func.func @transform_7(%arg0: i32, %arg1: i32) -> (i32, i32) {
    %c0_i32 = arith.constant 0 : i32
    %c0_i32_0 = arith.constant 0 : i32
    %c0_i32_1 = arith.constant 0 : i32
    return %c0_i32, %c0_i32_0 : i32, i32
  }
  func.func @transform_8(%arg0: i32, %arg1: i32) -> (i32, i32, i32, i32) {
    %c0_i32 = arith.constant 0 : i32
    %c0_i32_0 = arith.constant 0 : i32
    %c0_i32_1 = arith.constant 0 : i32
    return %arg0, %arg1, %c0_i32, %c0_i32_0 : i32, i32, i32, i32
  }
}

</mosaic_0001>

<llo_original>
// kernel: tpu_custom_call.1
$region0: #{tpu_custom_call.1}
  #allocation0 [shape = 'u32[]', space=smem, size = 0x4, offset = 0x4, fixed_abs, tag = 'smem constant byte address 0x4 - core index']
  #allocation1 [shape = 'u32[72,128]{1,0:T(1,128)}', space=vmem, size = 0x9000, scoped, tag = 'internal scratch']
  %s0 = inlined_call_operand.hbm [shape: f32[2,16,16,16], index: 0, kind: input, shape index: {}]
  %s1 = inlined_call_operand.vmem [shape: f32[2,1,32,16], index: 1, kind: input, shape index: {}]
  %s2 = inlined_call_operand.vmem [shape: bf16[16,4], index: 2, kind: input, shape index: {}]
  %s3 = inlined_call_operand.vmem [shape: f32[1,4], index: 3, kind: input, shape index: {}]
  %s4 = inlined_call_operand.vmem [shape: bf16[3,12,4], index: 4, kind: input, shape index: {}]
  %s5 = inlined_call_operand.vmem [shape: f32[1,4], index: 5, kind: input, shape index: {}]
  %s6 = inlined_call_operand.vmem [shape: bf16[4,16], index: 6, kind: input, shape index: {}]
  %s7 = inlined_call_operand.vmem [shape: f32[1,16], index: 7, kind: input, shape index: {}]
  %s8 = inlined_call_operand.hbm [shape: f32[2,16,16,16], index: 8, kind: output, shape index: {}]
  %s9 = sld [smem:[#allocation0]]
  $region69: #{tpu_custom_call.1} parent=0
    _
  %s11 = ssub.s32 1, %s9
  %s12 = scalar_select 0, %s11, %s9
  $region1: #{tpu_custom_call.1} parent=0
    #allocation2 [shape = 'u8[262144]{0}', space=vmem, size = 0x40000, scoped, tag = 'input window, operand 0']
    #allocation3 [shape = 's32[2]{0}', space=sflag, size = 0x8, scoped, tag = 'scoped memory for tpu_custom_call.1']
    #allocation4 [shape = 's32[2]{0}', space=sflag, size = 0x8, scoped, tag = 'scoped memory for tpu_custom_call.1']
    #allocation5 [shape = 'u8[262144]{0}', space=vmem, size = 0x40000, scoped, tag = 'output window, operand 0']
    %13 = vsyncpa [#allocation3], 0
    %s14 = scalar_lea.sflag [#allocation3], 1
    %15 = vsyncpa %s14, 0
    %16 = vsyncpa [#allocation4], 0
    %s17 = scalar_lea.sflag [#allocation4], 1
    %18 = vsyncpa %s17, 0
    loop: start=0, step=1, limit=4
    $region2: #{tpu_custom_call.1} parent=1 // loop_pre_header
      _
    $region3: #{tpu_custom_call.1} parent=1 // loop_header
      %s20 = sphi 0, %s24
      %p21 = scmp.ge.s32.totalorder %s20, 4
      %s27 = sphi 0, %s39
      %s28 = sphi 0, %s35
      %s29 = sphi 0, %s27
      %s30 = sphi 0, %s28
      %s31 = sphi 0, %s29
      %s32 = sphi 0, %s30
      %s44 = sphi 0, %s46
      %s47 = sphi 0, %s44
      %s48 = sphi 0, %s47
      %s64 = sphi 0, %s48
      %s72 = sphi 0, %s74
      %s75 = sphi 0, %s72
      %s76 = sphi 0, %s75
      %s92 = sphi 0, %s76
      %s96 = sphi 0, %s96
      %s98 = sphi 0, %s96
      %s99 = sphi 0, %s98
      %s113 = sphi 0, %s99
      %s117 = sphi 0, %s117
      %s119 = sphi 0, %s117
      %s120 = sphi 0, %s119
      %s134 = sphi 0, %s120
      %s138 = sphi 0, %s138
      %s140 = sphi 0, %s138
      %s141 = sphi 0, %s140
      %s155 = sphi 0, %s141
      %s159 = sphi 0, %s159
      %s161 = sphi 0, %s159
      %s162 = sphi 0, %s161
      %s176 = sphi 0, %s162
      %s180 = sphi 0, %s180
      %s182 = sphi 0, %s180
      %s183 = sphi 0, %s182
      %s197 = sphi 0, %s183
      %s201 = sphi 0, %s201
      %s203 = sphi 0, %s201
      %s204 = sphi 0, %s203
      %s218 = sphi 0, %s204
      %s226 = sphi 0, %s228
      %s229 = sphi 0, %s226
      %s230 = sphi 0, %s229
      %s246 = sphi 0, %s230
    $region4: #{tpu_custom_call.1} parent=1 // loop_header_branch
      %23 = sbr.rel (%p21) target = $region8
    $region5: #{tpu_custom_call.1} parent=1 // loop_body
      %s25 = ssub.s32 %s20, 1
      %s26 = ssub.s32 %s20, 2
      %s33 = sadd.s32 1, %s28
      %p34 = scmp.ge.s32.totalorder %s33, 1
      %s35 = scalar_select %p34, 0, %s33
      %s36 = sadd.s32 1, %s27
      %s37 = scalar_select %p34, %s36, %s27
      %p38 = scmp.ge.s32.totalorder %s37, 2
      %s39 = scalar_select %p38, 0, %s37
      %s40 = ssub.s32 %s27, %s39
      %s41 = ssub.s32 %s28, %s35
      %s42 = sor.u32 %s40, %s41
      %p43 = scmp.eq.s32.totalorder %s42, 0
      %s45 = sadd.s32 %s44, 1
      %s46 = scalar_select %p43, %s44, %s45
      %p49 = pneg %p43
      %p50 = scmp.eq.s32.totalorder %s20, 1
      %p51 = por %p49, %p50
      %p52 = scmp.ne.s32.totalorder %s44, %s47
      %p53 = scmp.eq.s32.totalorder %s20, 0
      %p54 = por %p52, %p53
      %p55 = scmp.ne.s32.totalorder %s44, %s47
      %p56 = scmp.eq.s32.totalorder %s25, 1
      %p57 = por %p55, %p56
      %p58 = scmp.ne.s32.totalorder %s47, %s48
      %p59 = scmp.eq.s32.totalorder %s25, 0
      %p60 = por %p58, %p59
      %p61 = scmp.ne.s32.totalorder %s47, %s48
      %p62 = scmp.eq.s32.totalorder %s26, 1
      %p63 = por %p61, %p62
      %p65 = scmp.ne.s32.totalorder %s48, %s64
      %p66 = scmp.eq.s32.totalorder %s26, 0
      %p67 = por %p65, %p66
      %s68 = ssub.s32 %s27, %s39
      %s69 = ssub.s32 %s28, %s35
      %s70 = sor.u32 %s68, %s69
      %p71 = scmp.eq.s32.totalorder %s70, 0
      %s73 = sadd.s32 %s72, 1
      %s74 = scalar_select %p71, %s72, %s73
      %p77 = pneg %p71
      %p78 = scmp.eq.s32.totalorder %s20, 1
      %p79 = por %p77, %p78
      %p80 = scmp.ne.s32.totalorder %s72, %s75
      %p81 = scmp.eq.s32.totalorder %s20, 0
      %p82 = por %p80, %p81
      %p83 = scmp.ne.s32.totalorder %s72, %s75
      %p84 = scmp.eq.s32.totalorder %s25, 1
      %p85 = por %p83, %p84
      %p86 = scmp.ne.s32.totalorder %s75, %s76
      %p87 = scmp.eq.s32.totalorder %s25, 0
      %p88 = por %p86, %p87
      %p89 = scmp.ne.s32.totalorder %s75, %s76
      %p90 = scmp.eq.s32.totalorder %s26, 1
      %p91 = por %p89, %p90
      %p93 = scmp.ne.s32.totalorder %s76, %s92
      %p94 = scmp.eq.s32.totalorder %s26, 0
      %p95 = por %p93, %p94
      %s97 = sadd.s32 %s96, 1
      %p100 = scmp.eq.s32.totalorder %s20, 1
      %p101 = scmp.ne.s32.totalorder %s96, %s98
      %p102 = scmp.eq.s32.totalorder %s20, 0
      %p103 = por %p101, %p102
      %p104 = scmp.ne.s32.totalorder %s96, %s98
      %p105 = scmp.eq.s32.totalorder %s25, 1
      %p106 = por %p104, %p105
      %p107 = scmp.ne.s32.totalorder %s98, %s99
      %p108 = scmp.eq.s32.totalorder %s25, 0
      %p109 = por %p107, %p108
      %p110 = scmp.ne.s32.totalorder %s98, %s99
      %p111 = scmp.eq.s32.totalorder %s26, 1
      %p112 = por %p110, %p111
      %p114 = scmp.ne.s32.totalorder %s99, %s113
      %p115 = scmp.eq.s32.totalorder %s26, 0
      %p116 = por %p114, %p115
      %s118 = sadd.s32 %s117, 1
      %p121 = scmp.eq.s32.totalorder %s20, 1
      %p122 = scmp.ne.s32.totalorder %s117, %s119
      %p123 = scmp.eq.s32.totalorder %s20, 0
      %p124 = por %p122, %p123
      %p125 = scmp.ne.s32.totalorder %s117, %s119
      %p126 = scmp.eq.s32.totalorder %s25, 1
      %p127 = por %p125, %p126
      %p128 = scmp.ne.s32.totalorder %s119, %s120
      %p129 = scmp.eq.s32.totalorder %s25, 0
      %p130 = por %p128, %p129
      %p131 = scmp.ne.s32.totalorder %s119, %s120
      %p132 = scmp.eq.s32.totalorder %s26, 1
      %p133 = por %p131, %p132
      %p135 = scmp.ne.s32.totalorder %s120, %s134
      %p136 = scmp.eq.s32.totalorder %s26, 0
      %p137 = por %p135, %p136
      %s139 = sadd.s32 %s138, 1
      %p142 = scmp.eq.s32.totalorder %s20, 1
      %p143 = scmp.ne.s32.totalorder %s138, %s140
      %p144 = scmp.eq.s32.totalorder %s20, 0
      %p145 = por %p143, %p144
      %p146 = scmp.ne.s32.totalorder %s138, %s140
      %p147 = scmp.eq.s32.totalorder %s25, 1
      %p148 = por %p146, %p147
      %p149 = scmp.ne.s32.totalorder %s140, %s141
      %p150 = scmp.eq.s32.totalorder %s25, 0
      %p151 = por %p149, %p150
      %p152 = scmp.ne.s32.totalorder %s140, %s141
      %p153 = scmp.eq.s32.totalorder %s26, 1
      %p154 = por %p152, %p153
      %p156 = scmp.ne.s32.totalorder %s141, %s155
      %p157 = scmp.eq.s32.totalorder %s26, 0
      %p158 = por %p156, %p157
      %s160 = sadd.s32 %s159, 1
      %p163 = scmp.eq.s32.totalorder %s20, 1
      %p164 = scmp.ne.s32.totalorder %s159, %s161
      %p165 = scmp.eq.s32.totalorder %s20, 0
      %p166 = por %p164, %p165
      %p167 = scmp.ne.s32.totalorder %s159, %s161
      %p168 = scmp.eq.s32.totalorder %s25, 1
      %p169 = por %p167, %p168
      %p170 = scmp.ne.s32.totalorder %s161, %s162
      %p171 = scmp.eq.s32.totalorder %s25, 0
      %p172 = por %p170, %p171
      %p173 = scmp.ne.s32.totalorder %s161, %s162
      %p174 = scmp.eq.s32.totalorder %s26, 1
      %p175 = por %p173, %p174
      %p177 = scmp.ne.s32.totalorder %s162, %s176
      %p178 = scmp.eq.s32.totalorder %s26, 0
      %p179 = por %p177, %p178
      %s181 = sadd.s32 %s180, 1
      %p184 = scmp.eq.s32.totalorder %s20, 1
      %p185 = scmp.ne.s32.totalorder %s180, %s182
      %p186 = scmp.eq.s32.totalorder %s20, 0
      %p187 = por %p185, %p186
      %p188 = scmp.ne.s32.totalorder %s180, %s182
      %p189 = scmp.eq.s32.totalorder %s25, 1
      %p190 = por %p188, %p189
      %p191 = scmp.ne.s32.totalorder %s182, %s183
      %p192 = scmp.eq.s32.totalorder %s25, 0
      %p193 = por %p191, %p192
      %p194 = scmp.ne.s32.totalorder %s182, %s183
      %p195 = scmp.eq.s32.totalorder %s26, 1
      %p196 = por %p194, %p195
      %p198 = scmp.ne.s32.totalorder %s183, %s197
      %p199 = scmp.eq.s32.totalorder %s26, 0
      %p200 = por %p198, %p199
      %s202 = sadd.s32 %s201, 1
      %p205 = scmp.eq.s32.totalorder %s20, 1
      %p206 = scmp.ne.s32.totalorder %s201, %s203
      %p207 = scmp.eq.s32.totalorder %s20, 0
      %p208 = por %p206, %p207
      %p209 = scmp.ne.s32.totalorder %s201, %s203
      %p210 = scmp.eq.s32.totalorder %s25, 1
      %p211 = por %p209, %p210
      %p212 = scmp.ne.s32.totalorder %s203, %s204
      %p213 = scmp.eq.s32.totalorder %s25, 0
      %p214 = por %p212, %p213
      %p215 = scmp.ne.s32.totalorder %s203, %s204
      %p216 = scmp.eq.s32.totalorder %s26, 1
      %p217 = por %p215, %p216
      %p219 = scmp.ne.s32.totalorder %s204, %s218
      %p220 = scmp.eq.s32.totalorder %s26, 0
      %p221 = por %p219, %p220
      %s222 = ssub.s32 %s27, %s39
      %s223 = ssub.s32 %s28, %s35
      %s224 = sor.u32 %s222, %s223
      %p225 = scmp.eq.s32.totalorder %s224, 0
      %s227 = sadd.s32 %s226, 1
      %s228 = scalar_select %p225, %s226, %s227
      %p231 = pneg %p225
      %p232 = scmp.eq.s32.totalorder %s20, 1
      %p233 = por %p231, %p232
      %p234 = scmp.ne.s32.totalorder %s226, %s229
      %p235 = scmp.eq.s32.totalorder %s20, 0
      %p236 = por %p234, %p235
      %p237 = scmp.ne.s32.totalorder %s226, %s229
      %p238 = scmp.eq.s32.totalorder %s25, 1
      %p239 = por %p237, %p238
      %p240 = scmp.ne.s32.totalorder %s229, %s230
      %p241 = scmp.eq.s32.totalorder %s25, 0
      %p242 = por %p240, %p241
      %p243 = scmp.ne.s32.totalorder %s229, %s230
      %p244 = scmp.eq.s32.totalorder %s26, 1
      %p245 = por %p243, %p244
      %p247 = scmp.ne.s32.totalorder %s230, %s246
      %p248 = scmp.eq.s32.totalorder %s26, 0
      %p249 = por %p247, %p248
      %p250 = scmp.le.s32.totalorder 1, %s20
      %p251 = scmp.lt.s32.totalorder %s20, 3
      %p252 = pnand %p250, %p251
      %p253 = pneg %p252
      // Predicated region
      $region9: #{tpu_custom_call.1} parent=5 // pred_check
        _
      $region10: #{tpu_custom_call.1} parent=5 // pred_check_branch
        %255 = sbr.rel (%p252) target = $region12
      $region11: #{tpu_custom_call.1} parent=5 // pred_region
        %s256 = ssub.s32 %s20, 1
        // Predicated region
        $region13: #{tpu_custom_call.1} parent=11 // pred_check
          %p257 = pneg %p109
        $region14: #{tpu_custom_call.1} parent=11 // pred_check_branch
          %259 = sbr.rel (%p257) target = $region16
        $region15: #{tpu_custom_call.1} parent=11 // pred_region
          _
        $region16: #{tpu_custom_call.1} parent=11 // pred_fallthru
          _
        // Predicated region
        $region17: #{tpu_custom_call.1} parent=11 // pred_check
          %p260 = pneg %p130
        $region18: #{tpu_custom_call.1} parent=11 // pred_check_branch
          %262 = sbr.rel (%p260) target = $region20
        $region19: #{tpu_custom_call.1} parent=11 // pred_region
          _
        $region20: #{tpu_custom_call.1} parent=11 // pred_fallthru
          _
        // Predicated region
        $region21: #{tpu_custom_call.1} parent=11 // pred_check
          %p263 = pneg %p151
        $region22: #{tpu_custom_call.1} parent=11 // pred_check_branch
          %265 = sbr.rel (%p263) target = $region24
        $region23: #{tpu_custom_call.1} parent=11 // pred_region
          _
        $region24: #{tpu_custom_call.1} parent=11 // pred_fallthru
          _
        // Predicated region
        $region25: #{tpu_custom_call.1} parent=11 // pred_check
          %p266 = pneg %p172
        $region26: #{tpu_custom_call.1} parent=11 // pred_check_branch
          %268 = sbr.rel (%p266) target = $region28
        $region27: #{tpu_custom_call.1} parent=11 // pred_region
          _
        $region28: #{tpu_custom_call.1} parent=11 // pred_fallthru
          _
        // Predicated region
        $region29: #{tpu_custom_call.1} parent=11 // pred_check
          %p269 = pneg %p193
        $region30: #{tpu_custom_call.1} parent=11 // pred_check_branch
          %271 = sbr.rel (%p269) target = $region32
        $region31: #{tpu_custom_call.1} parent=11 // pred_region
          _
        $region32: #{tpu_custom_call.1} parent=11 // pred_fallthru
          _
        // Predicated region
        $region33: #{tpu_custom_call.1} parent=11 // pred_check
          %p272 = pneg %p214
        $region34: #{tpu_custom_call.1} parent=11 // pred_check_branch
          %274 = sbr.rel (%p272) target = $region36
        $region35: #{tpu_custom_call.1} parent=11 // pred_region
          _
        $region36: #{tpu_custom_call.1} parent=11 // pred_fallthru
          _
      $region12: #{tpu_custom_call.1} parent=5 // pred_fallthru
        _
      %p275 = scmp.lt.s32.totalorder %s20, 2
      // Predicated region
      $region37: #{tpu_custom_call.1} parent=5 // pred_check
        %p276 = pneg %p275
      $region38: #{tpu_custom_call.1} parent=5 // pred_check_branch
        %278 = sbr.rel (%p276) target = $region40
      $region39: #{tpu_custom_call.1} parent=5 // pred_region
        // Predicated region
        $region41: #{tpu_custom_call.1} parent=39 // pred_check
          %p279 = pneg %p54
        $region42: #{tpu_custom_call.1} parent=39 // pred_check_branch
          %281 = sbr.rel (%p279) target = $region44
        $region43: #{tpu_custom_call.1} parent=39 // pred_region
          %s282 = sand.u32 %s44, 1
          %s283 = scalar_lea.sflag [#allocation3], %s282
          %s284 = sand.u32 %s44, 1
          %s285 = smul.addr %s284, 256
          %s286 = scalar_lea.vmem [#allocation2], %s285
          %s287 = smul.u32 16, %s28
          %289 = vsyncadd %s283, 0
          %s290 = smul.addr %s287, 2
          %s291 = smul.addr %s27, 32
          %s292 = sadd.s32 %s290, %s291
          %s293 = smul.addr %s292, 8
          %s294 = scalar_lea.hbm %s0, %s293
          %s295 = sshll.u32 %s294, 4
          %s296 = int_to_ptr.hbm [resolvable:$true] %s295
          %s297 = sshll.u32 %s286, 4
          %s298 = int_to_ptr.vmem [resolvable:$true] %s297
          %303 = dma.hbm_to_vmem [thread:$0]  %s296, 4096, %s298, %s283, 128, 128, 8
        $region44: #{tpu_custom_call.1} parent=39 // pred_fallthru
          _
        // Predicated region
        $region45: #{tpu_custom_call.1} parent=39 // pred_check
          %p304 = pneg %p82
        $region46: #{tpu_custom_call.1} parent=39 // pred_check_branch
          %306 = sbr.rel (%p304) target = $region48
        $region47: #{tpu_custom_call.1} parent=39 // pred_region
          %p307 = scmp.lt.s32.totalorder %s27, 1
          %s308 = scalar_select %p307, %s27, 1
          %p309 = scmp.lt.s32.totalorder %s28, 0
          %s310 = scalar_select %p309, %s28, 0
          %s311 = smul.addr %s310, 4
          %s312 = smul.addr %s308, 4
          %s313 = sadd.s32 %s311, %s312
          %s314 = smul.addr %s313, 8
          %s315 = scalar_lea.vmem %s1, %s314
        $region48: #{tpu_custom_call.1} parent=39 // pred_fallthru
          _
      $region40: #{tpu_custom_call.1} parent=5 // pred_fallthru
        _
      %p316 = scmp.le.s32.totalorder 1, %s20
      %p317 = scmp.lt.s32.totalorder %s20, 3
      %p318 = pnand %p316, %p317
      %p319 = pneg %p318
      // Predicated region
      $region49: #{tpu_custom_call.1} parent=5 // pred_check
        _
      $region50: #{tpu_custom_call.1} parent=5 // pred_check_branch
        %321 = sbr.rel (%p318) target = $region52
      $region51: #{tpu_custom_call.1} parent=5 // pred_region
        %s322 = ssub.s32 %s20, 1
        %s323 = sand.u32 %s47, 1
        %s324 = scalar_lea.sflag [#allocation3], %s323
        %s325 = sand.u32 %s47, 1
        %s326 = smul.addr %s325, 256
        %s327 = scalar_lea.vmem [#allocation2], %s326
        // Predicated region
        $region53: #{tpu_custom_call.1} parent=51 // pred_check
          %p328 = pneg %p60
        $region54: #{tpu_custom_call.1} parent=51 // pred_check_branch
          %330 = sbr.rel (%p328) target = $region56
        $region55: #{tpu_custom_call.1} parent=51 // pred_region
          %332 = dma.done %s324, 4096
        $region56: #{tpu_custom_call.1} parent=51 // pred_fallthru
          _
        %s333 = sand.u32 %s47, 1
        %s334 = scalar_lea.sflag [#allocation3], %s333
        %s335 = sand.u32 %s47, 1
        %s336 = smul.addr %s335, 256
        %s337 = scalar_lea.vmem [#allocation2], %s336
        %p338 = pneg %p60
        %p339 = pneg %p57
        %p340 = scmp.lt.s32.totalorder %s29, 1
        %s341 = scalar_select %p340, %s29, 1
        %p342 = scmp.lt.s32.totalorder %s30, 0
        %s343 = scalar_select %p342, %s30, 0
        %s344 = smul.addr %s343, 4
        %s345 = smul.addr %s341, 4
        %s346 = sadd.s32 %s344, %s345
        %s347 = smul.addr %s346, 8
        %s348 = scalar_lea.vmem %s1, %s347
        %p349 = pneg %p88
        %p350 = pneg %p85
        %p351 = pneg %p109
        %p352 = pneg %p106
        %p353 = pneg %p130
        %p354 = pneg %p127
        %p355 = pneg %p151
        %p356 = pneg %p148
        %p357 = pneg %p172
        %p358 = pneg %p169
        %p359 = pneg %p193
        %p360 = pneg %p190
        %p361 = pneg %p214
        %p362 = pneg %p211
        %p363 = pneg %p242
        %p364 = pneg %p239
        %s365 = sand.u32 %s229, 1
        %s366 = scalar_lea.sflag [#allocation4], %s365
        %s367 = sand.u32 %s229, 1
        %s368 = smul.addr %s367, 256
        %s369 = scalar_lea.vmem [#allocation5], %s368
        %s370 = smul.u32 16, %s30
        %p371 = scmp.lt.s32.totalorder %s29, 1
        %s372 = scalar_select %p371, %s29, 1
        %p373 = scmp.lt.s32.totalorder %s30, 0
        %s374 = scalar_select %p373, %s30, 0
        %s375 = smul.addr %s374, 4
        %s376 = smul.addr %s372, 4
        %s377 = sadd.s32 %s375, %s376
        %s378 = smul.addr %s377, 8
        %s379 = scalar_lea.vmem %s1, %s378
        %s380 = smul.u32 16, %s30
        %v382 = vld [vmem:[%s2] sm:$0xf]
        %v383 = vld [vmem:[%s2 + $0x4] sm:$0xf]
        %v384 = vld [vmem:[%s3] sm:$0x1]
        %v385 = vld [vmem:[%s327] sm:$0xff]
        %v386 = vld [vmem:[%s327 + $0x8] sm:$0xff]
        %v387 = vld [vmem:[%s327 + $0x10] sm:$0xff]
        %v388 = vld [vmem:[%s327 + $0x18] sm:$0xff]
        %v389 = vld [vmem:[%s327 + $0x20] sm:$0xff]
        %v390 = vld [vmem:[%s327 + $0x28] sm:$0xff]
        %v391 = vld [vmem:[%s327 + $0x30] sm:$0xff]
        %v392 = vld [vmem:[%s327 + $0x38] sm:$0xff]
        %v393 = vld [vmem:[%s327 + $0x40] sm:$0xff]
        %v394 = vld [vmem:[%s327 + $0x48] sm:$0xff]
        %v395 = vld [vmem:[%s327 + $0x50] sm:$0xff]
        %v396 = vld [vmem:[%s327 + $0x58] sm:$0xff]
        %v397 = vld [vmem:[%s327 + $0x60] sm:$0xff]
        %v398 = vld [vmem:[%s327 + $0x68] sm:$0xff]
        %v399 = vld [vmem:[%s327 + $0x70] sm:$0xff]
        %v400 = vld [vmem:[%s327 + $0x78] sm:$0xff]
        %v401 = vld [vmem:[%s327 + $0x80] sm:$0xff]
        %v402 = vld [vmem:[%s327 + $0x88] sm:$0xff]
        %v403 = vld [vmem:[%s327 + $0x90] sm:$0xff]
        %v404 = vld [vmem:[%s327 + $0x98] sm:$0xff]
        %v405 = vld [vmem:[%s327 + $0xa0] sm:$0xff]
        %v406 = vld [vmem:[%s327 + $0xa8] sm:$0xff]
        %v407 = vld [vmem:[%s327 + $0xb0] sm:$0xff]
        %v408 = vld [vmem:[%s327 + $0xb8] sm:$0xff]
        %v409 = vld [vmem:[%s327 + $0xc0] sm:$0xff]
        %v410 = vld [vmem:[%s327 + $0xc8] sm:$0xff]
        %v411 = vld [vmem:[%s327 + $0xd0] sm:$0xff]
        %v412 = vld [vmem:[%s327 + $0xd8] sm:$0xff]
        %v413 = vld [vmem:[%s327 + $0xe0] sm:$0xff]
        %v414 = vld [vmem:[%s327 + $0xe8] sm:$0xff]
        %v415 = vld [vmem:[%s327 + $0xf0] sm:$0xff]
        %v416 = vld [vmem:[%s327 + $0xf8] sm:$0xff]
        %v417 = vpack.c.bf16 %v386, %v385
        %v418 = vpack.c.bf16 %v388, %v387
        %v419 = vpack.c.bf16 %v390, %v389
        %v420 = vpack.c.bf16 %v392, %v391
        %v421 = vpack.c.bf16 %v394, %v393
        %v422 = vpack.c.bf16 %v396, %v395
        %v423 = vpack.c.bf16 %v398, %v397
        %v424 = vpack.c.bf16 %v400, %v399
        %v425 = vpack.c.bf16 %v402, %v401
        %v426 = vpack.c.bf16 %v404, %v403
        %v427 = vpack.c.bf16 %v406, %v405
        %v428 = vpack.c.bf16 %v408, %v407
        %v429 = vpack.c.bf16 %v410, %v409
        %v430 = vpack.c.bf16 %v412, %v411
        %v431 = vpack.c.bf16 %v414, %v413
        %v432 = vpack.c.bf16 %v416, %v415
        %v434 = vperm.slane %v384, 0
        %v438 = vunpack.c.l.b16 %v382
        %v439 = vunpack.c.l.b16 %v383
        %v440 = vpack.c.b16 %v439, %v438
        %vm442 = vcmask 130048
        %v444 = vsel %vm442, %v417, 0
        %v447 = vsel %vm442, %v418, 0
        %v450 = vsel %vm442, %v419, 0
        %v453 = vsel %vm442, %v420, 0
        %v456 = vsel %vm442, %v421, 0
        %v459 = vsel %vm442, %v422, 0
        %v462 = vsel %vm442, %v423, 0
        %v465 = vsel %vm442, %v424, 0
        %v468 = vsel %vm442, %v425, 0
        %v471 = vsel %vm442, %v426, 0
        %v474 = vsel %vm442, %v427, 0
        %v477 = vsel %vm442, %v428, 0
        %v480 = vsel %vm442, %v429, 0
        %v483 = vsel %vm442, %v430, 0
        %v486 = vsel %vm442, %v431, 0
        %v489 = vsel %vm442, %v432, 0
        %491 = vmatpush.bf16.msra.mxu0 0
        %492 = vmatpush.bf16.msra.mxu0 0
        %493 = vmatpush.bf16.msra.mxu0 0
        %494 = vmatpush.bf16.msra.mxu0 0
        %495 = vmatpush.bf16.msra.mxu0 0
        %496 = vmatpush.bf16.msra.mxu0 0
        %497 = vmatpush.bf16.msra.mxu0 0
        %498 = vmatpush.bf16.msra.mxu0 %v440
        %499 = vmatmul.bf16.gmra.mxu0 %v444
        %v500 = vpop.f32.mrf.mxu0
        %v501 = vadd.f32 %v434, %v500
        %v502 = vpop.f32.mrf.mxu0
        %v503 = vadd.f32 %v434, %v502
        %504 = vmatmul.bf16.gmra.mxu0 %v447
        %v505 = vpop.f32.mrf.mxu0
        %v506 = vadd.f32 %v434, %v505
        %v507 = vpop.f32.mrf.mxu0
        %v508 = vadd.f32 %v434, %v507
        %509 = vmatmul.bf16.gmra.mxu0 %v450
        %v510 = vpop.f32.mrf.mxu0
        %v511 = vadd.f32 %v434, %v510
        %v512 = vpop.f32.mrf.mxu0
        %v513 = vadd.f32 %v434, %v512
        %514 = vmatmul.bf16.gmra.mxu0 %v453
        %v515 = vpop.f32.mrf.mxu0
        %v516 = vadd.f32 %v434, %v515
        %v517 = vpop.f32.mrf.mxu0
        %v518 = vadd.f32 %v434, %v517
        %519 = vmatmul.bf16.gmra.mxu0 %v456
        %v520 = vpop.f32.mrf.mxu0
        %v521 = vadd.f32 %v434, %v520
        %v522 = vpop.f32.mrf.mxu0
        %v523 = vadd.f32 %v434, %v522
        %524 = vmatmul.bf16.gmra.mxu0 %v459
        %v525 = vpop.f32.mrf.mxu0
        %v526 = vadd.f32 %v434, %v525
        %v527 = vpop.f32.mrf.mxu0
        %v528 = vadd.f32 %v434, %v527
        %529 = vmatmul.bf16.gmra.mxu0 %v462
        %v530 = vpop.f32.mrf.mxu0
        %v531 = vadd.f32 %v434, %v530
        %v532 = vpop.f32.mrf.mxu0
        %v533 = vadd.f32 %v434, %v532
        %534 = vmatmul.bf16.gmra.mxu0 %v465
        %v535 = vpop.f32.mrf.mxu0
        %v536 = vadd.f32 %v434, %v535
        %v537 = vpop.f32.mrf.mxu0
        %v538 = vadd.f32 %v434, %v537
        %539 = vmatmul.bf16.gmra.mxu0 %v468
        %v540 = vpop.f32.mrf.mxu0
        %v541 = vadd.f32 %v434, %v540
        %v542 = vpop.f32.mrf.mxu0
        %v543 = vadd.f32 %v434, %v542
        %544 = vmatmul.bf16.gmra.mxu0 %v471
        %v545 = vpop.f32.mrf.mxu0
        %v546 = vadd.f32 %v434, %v545
        %v547 = vpop.f32.mrf.mxu0
        %v548 = vadd.f32 %v434, %v547
        %549 = vmatmul.bf16.gmra.mxu0 %v474
        %v550 = vpop.f32.mrf.mxu0
        %v551 = vadd.f32 %v434, %v550
        %v552 = vpop.f32.mrf.mxu0
        %v553 = vadd.f32 %v434, %v552
        %554 = vmatmul.bf16.gmra.mxu0 %v477
        %v555 = vpop.f32.mrf.mxu0
        %v556 = vadd.f32 %v434, %v555
        %v557 = vpop.f32.mrf.mxu0
        %v558 = vadd.f32 %v434, %v557
        %559 = vmatmul.bf16.gmra.mxu0 %v480
        %v560 = vpop.f32.mrf.mxu0
        %v561 = vadd.f32 %v434, %v560
        %v562 = vpop.f32.mrf.mxu0
        %v563 = vadd.f32 %v434, %v562
        %564 = vmatmul.bf16.gmra.mxu0 %v483
        %v565 = vpop.f32.mrf.mxu0
        %v566 = vadd.f32 %v434, %v565
        %v567 = vpop.f32.mrf.mxu0
        %v568 = vadd.f32 %v434, %v567
        %569 = vmatmul.bf16.gmra.mxu0 %v486
        %v570 = vpop.f32.mrf.mxu0
        %v571 = vadd.f32 %v434, %v570
        %v572 = vpop.f32.mrf.mxu0
        %v573 = vadd.f32 %v434, %v572
        %574 = vmatmul.bf16.gmra.mxu0 %v489
        %v575 = vpop.f32.mrf.mxu0
        %v576 = vadd.f32 %v434, %v575
        %v577 = vpop.f32.mrf.mxu0
        %v578 = vadd.f32 %v434, %v577
        %579 = vdwg.mxu0
        %v580 = vmax.f32 %v501, 0.0
        %v581 = vmax.f32 %v503, 0.0
        %v582 = vmax.f32 %v506, 0.0
        %v583 = vmax.f32 %v508, 0.0
        %v584 = vmax.f32 %v511, 0.0
        %v585 = vmax.f32 %v513, 0.0
        %v586 = vmax.f32 %v516, 0.0
        %v587 = vmax.f32 %v518, 0.0
        %v588 = vmax.f32 %v521, 0.0
        %v589 = vmax.f32 %v523, 0.0
        %v590 = vmax.f32 %v526, 0.0
        %v591 = vmax.f32 %v528, 0.0
        %v592 = vmax.f32 %v531, 0.0
        %v593 = vmax.f32 %v533, 0.0
        %v594 = vmax.f32 %v536, 0.0
        %v595 = vmax.f32 %v538, 0.0
        %v596 = vmax.f32 %v541, 0.0
        %v597 = vmax.f32 %v543, 0.0
        %v598 = vmax.f32 %v546, 0.0
        %v599 = vmax.f32 %v548, 0.0
        %v600 = vmax.f32 %v551, 0.0
        %v601 = vmax.f32 %v553, 0.0
        %v602 = vmax.f32 %v556, 0.0
        %v603 = vmax.f32 %v558, 0.0
        %v604 = vmax.f32 %v561, 0.0
        %v605 = vmax.f32 %v563, 0.0
        %v606 = vmax.f32 %v566, 0.0
        %v607 = vmax.f32 %v568, 0.0
        %v608 = vmax.f32 %v571, 0.0
        %v609 = vmax.f32 %v573, 0.0
        %v610 = vmax.f32 %v576, 0.0
        %v611 = vmax.f32 %v578, 0.0
        %v612 = vld [vmem:[%s379] sm:$0xff]
        %v613 = vld [vmem:[%s379 + $0x8] sm:$0xff]
        %v614 = vld [vmem:[%s379 + $0x10] sm:$0xff]
        %v615 = vld [vmem:[%s379 + $0x18] sm:$0xff]
        %v616 = vpack.c.bf16 %v613, %v612
        %v617 = vpack.c.bf16 %v615, %v614
        %v619 = vsel %vm442, %v616, 0
        %v622 = vsel %vm442, %v617, 0
        %624 = vmatpush.bf16.msra.mxu0 0
        %625 = vmatpush.bf16.msra.mxu0 0
        %626 = vmatpush.bf16.msra.mxu0 0
        %627 = vmatpush.bf16.msra.mxu0 0
        %628 = vmatpush.bf16.msra.mxu0 0
        %629 = vmatpush.bf16.msra.mxu0 0
        %630 = vmatpush.bf16.msra.mxu0 0
        %631 = vmatpush.bf16.msra.mxu0 %v440
        %632 = vmatmul.bf16.gmra.mxu0 %v619
        %v633 = vpop.f32.mrf.mxu0
        %v634 = vadd.f32 %v434, %v633
        %v635 = vpop.f32.mrf.mxu0
        %v636 = vadd.f32 %v434, %v635
        %637 = vmatmul.bf16.gmra.mxu0 %v622
        %v638 = vpop.f32.mrf.mxu0
        %v639 = vadd.f32 %v434, %v638
        %v640 = vpop.f32.mrf.mxu0
        %v641 = vadd.f32 %v434, %v640
        %642 = vdwg.mxu0
        %v643 = vmax.f32 %v634, 0.0
        %v644 = vmax.f32 %v636, 0.0
        %v645 = vmax.f32 %v639, 0.0
        %v646 = vmax.f32 %v641, 0.0
        %p647 = scmp.gt.s32.totalorder %s30, 0
        %s648 = scalar_select %p647, 1, 0
        %s649 = scvt.s32.f32 %s648
        %p650 = scmp.lt.s32.totalorder %s30, 0
        %s651 = scalar_select %p650, 1, 0
        %s652 = scvt.s32.f32 %s651
        %v653 = vstv %s649
        %v654 = vmul.f32 %v643, %v653
        %v655 = vmul.f32 %v644, %v653
        %v656 = vstv %s652
        %v657 = vmul.f32 %v645, %v656
        %v658 = vmul.f32 %v646, %v656
        %v659 = vlaneseq
        %v660 = vshrl.u32 %v659, 7
        %v661 = vadd.s32 %v660, 8
        %v662 = vadd.s32 %v660, 16
        %v663 = vadd.s32 %v660, 24
        %v664 = vadd.s32 %v660, 32
        %v665 = vadd.s32 %v660, 40
        %v666 = vadd.s32 %v660, 48
        %v667 = vadd.s32 %v660, 56
        %v668 = vadd.s32 %v660, 64
        %v669 = vadd.s32 %v660, 72
        %v670 = vadd.s32 %v660, 80
        %v671 = vadd.s32 %v660, 88
        %v672 = vadd.s32 %v660, 96
        %v673 = vadd.s32 %v660, 104
        %v674 = vadd.s32 %v660, 112
        %v675 = vadd.s32 %v660, 120
        %v676 = vadd.s32 %v660, 128
        %v677 = vadd.s32 %v660, 136
        %v678 = vadd.s32 %v660, 144
        %v679 = vadd.s32 %v660, 152
        %v680 = vadd.s32 %v660, 160
        %v681 = vadd.s32 %v660, 168
        %v682 = vadd.s32 %v660, 176
        %v683 = vadd.s32 %v660, 184
        %v684 = vadd.s32 %v660, 192
        %v685 = vadd.s32 %v660, 200
        %v686 = vadd.s32 %v660, 208
        %v687 = vadd.s32 %v660, 216
        %v688 = vadd.s32 %v660, 224
        %v689 = vadd.s32 %v660, 232
        %v690 = vadd.s32 %v660, 240
        %v691 = vadd.s32 %v660, 248
        %v692 = vadd.s32 %v660, 256
        %v693 = vadd.s32 %v660, 264
        %v694 = vadd.s32 %v660, 272
        %v695 = vadd.s32 %v660, 280
        %vm696 = vcmp.lt.s32.totalorder %v660, 0
        %v697 = vsub.s32 0, %v660
        %v698 = vsel %vm696, %v697, %v660
        %v699 = vshrl.u32 %v698, 4
        %v700 = vand.u32 %v698, 15
        %v701 = vsub.s32 0, %v700
        %v702 = vsel %vm696, %v701, %v700
        %vm703 = vcmp.lt.s32.totalorder %v661, 0
        %v704 = vsub.s32 0, %v661
        %v705 = vsel %vm703, %v704, %v661
        %v706 = vshrl.u32 %v705, 4
        %v707 = vand.u32 %v705, 15
        %v708 = vsub.s32 0, %v707
        %v709 = vsel %vm703, %v708, %v707
        %vm710 = vcmp.lt.s32.totalorder %v662, 0
        %v711 = vsub.s32 0, %v662
        %v712 = vsel %vm710, %v711, %v662
        %v713 = vshrl.u32 %v712, 4
        %v714 = vand.u32 %v712, 15
        %v715 = vsub.s32 0, %v714
        %v716 = vsel %vm710, %v715, %v714
        %vm717 = vcmp.lt.s32.totalorder %v663, 0
        %v718 = vsub.s32 0, %v663
        %v719 = vsel %vm717, %v718, %v663
        %v720 = vshrl.u32 %v719, 4
        %v721 = vand.u32 %v719, 15
        %v722 = vsub.s32 0, %v721
        %v723 = vsel %vm717, %v722, %v721
        %vm724 = vcmp.lt.s32.totalorder %v664, 0
        %v725 = vsub.s32 0, %v664
        %v726 = vsel %vm724, %v725, %v664
        %v727 = vshrl.u32 %v726, 4
        %v728 = vand.u32 %v726, 15
        %v729 = vsub.s32 0, %v728
        %v730 = vsel %vm724, %v729, %v728
        %vm731 = vcmp.lt.s32.totalorder %v665, 0
        %v732 = vsub.s32 0, %v665
        %v733 = vsel %vm731, %v732, %v665
        %v734 = vshrl.u32 %v733, 4
        %v735 = vand.u32 %v733, 15
        %v736 = vsub.s32 0, %v735
        %v737 = vsel %vm731, %v736, %v735
        %vm738 = vcmp.lt.s32.totalorder %v666, 0
        %v739 = vsub.s32 0, %v666
        %v740 = vsel %vm738, %v739, %v666
        %v741 = vshrl.u32 %v740, 4
        %v742 = vand.u32 %v740, 15
        %v743 = vsub.s32 0, %v742
        %v744 = vsel %vm738, %v743, %v742
        %vm745 = vcmp.lt.s32.totalorder %v667, 0
        %v746 = vsub.s32 0, %v667
        %v747 = vsel %vm745, %v746, %v667
        %v748 = vshrl.u32 %v747, 4
        %v749 = vand.u32 %v747, 15
        %v750 = vsub.s32 0, %v749
        %v751 = vsel %vm745, %v750, %v749
        %vm752 = vcmp.lt.s32.totalorder %v668, 0
        %v753 = vsub.s32 0, %v668
        %v754 = vsel %vm752, %v753, %v668
        %v755 = vshrl.u32 %v754, 4
        %v756 = vand.u32 %v754, 15
        %v757 = vsub.s32 0, %v756
        %v758 = vsel %vm752, %v757, %v756
        %vm759 = vcmp.lt.s32.totalorder %v669, 0
        %v760 = vsub.s32 0, %v669
        %v761 = vsel %vm759, %v760, %v669
        %v762 = vshrl.u32 %v761, 4
        %v763 = vand.u32 %v761, 15
        %v764 = vsub.s32 0, %v763
        %v765 = vsel %vm759, %v764, %v763
        %vm766 = vcmp.lt.s32.totalorder %v670, 0
        %v767 = vsub.s32 0, %v670
        %v768 = vsel %vm766, %v767, %v670
        %v769 = vshrl.u32 %v768, 4
        %v770 = vand.u32 %v768, 15
        %v771 = vsub.s32 0, %v770
        %v772 = vsel %vm766, %v771, %v770
        %vm773 = vcmp.lt.s32.totalorder %v671, 0
        %v774 = vsub.s32 0, %v671
        %v775 = vsel %vm773, %v774, %v671
        %v776 = vshrl.u32 %v775, 4
        %v777 = vand.u32 %v775, 15
        %v778 = vsub.s32 0, %v777
        %v779 = vsel %vm773, %v778, %v777
        %vm780 = vcmp.lt.s32.totalorder %v672, 0
        %v781 = vsub.s32 0, %v672
        %v782 = vsel %vm780, %v781, %v672
        %v783 = vshrl.u32 %v782, 4
        %v784 = vand.u32 %v782, 15
        %v785 = vsub.s32 0, %v784
        %v786 = vsel %vm780, %v785, %v784
        %vm787 = vcmp.lt.s32.totalorder %v673, 0
        %v788 = vsub.s32 0, %v673
        %v789 = vsel %vm787, %v788, %v673
        %v790 = vshrl.u32 %v789, 4
        %v791 = vand.u32 %v789, 15
        %v792 = vsub.s32 0, %v791
        %v793 = vsel %vm787, %v792, %v791
        %vm794 = vcmp.lt.s32.totalorder %v674, 0
        %v795 = vsub.s32 0, %v674
        %v796 = vsel %vm794, %v795, %v674
        %v797 = vshrl.u32 %v796, 4
        %v798 = vand.u32 %v796, 15
        %v799 = vsub.s32 0, %v798
        %v800 = vsel %vm794, %v799, %v798
        %vm801 = vcmp.lt.s32.totalorder %v675, 0
        %v802 = vsub.s32 0, %v675
        %v803 = vsel %vm801, %v802, %v675
        %v804 = vshrl.u32 %v803, 4
        %v805 = vand.u32 %v803, 15
        %v806 = vsub.s32 0, %v805
        %v807 = vsel %vm801, %v806, %v805
        %vm808 = vcmp.lt.s32.totalorder %v676, 0
        %v809 = vsub.s32 0, %v676
        %v810 = vsel %vm808, %v809, %v676
        %v811 = vshrl.u32 %v810, 4
        %v812 = vand.u32 %v810, 15
        %v813 = vsub.s32 0, %v812
        %v814 = vsel %vm808, %v813, %v812
        %vm815 = vcmp.lt.s32.totalorder %v677, 0
        %v816 = vsub.s32 0, %v677
        %v817 = vsel %vm815, %v816, %v677
        %v818 = vshrl.u32 %v817, 4
        %v819 = vand.u32 %v817, 15
        %v820 = vsub.s32 0, %v819
        %v821 = vsel %vm815, %v820, %v819
        %vm822 = vcmp.lt.s32.totalorder %v678, 0
        %v823 = vsub.s32 0, %v678
        %v824 = vsel %vm822, %v823, %v678
        %v825 = vshrl.u32 %v824, 4
        %v826 = vand.u32 %v824, 15
        %v827 = vsub.s32 0, %v826
        %v828 = vsel %vm822, %v827, %v826
        %vm829 = vcmp.lt.s32.totalorder %v679, 0
        %v830 = vsub.s32 0, %v679
        %v831 = vsel %vm829, %v830, %v679
        %v832 = vshrl.u32 %v831, 4
        %v833 = vand.u32 %v831, 15
        %v834 = vsub.s32 0, %v833
        %v835 = vsel %vm829, %v834, %v833
        %vm836 = vcmp.lt.s32.totalorder %v680, 0
        %v837 = vsub.s32 0, %v680
        %v838 = vsel %vm836, %v837, %v680
        %v839 = vshrl.u32 %v838, 4
        %v840 = vand.u32 %v838, 15
        %v841 = vsub.s32 0, %v840
        %v842 = vsel %vm836, %v841, %v840
        %vm843 = vcmp.lt.s32.totalorder %v681, 0
        %v844 = vsub.s32 0, %v681
        %v845 = vsel %vm843, %v844, %v681
        %v846 = vshrl.u32 %v845, 4
        %v847 = vand.u32 %v845, 15
        %v848 = vsub.s32 0, %v847
        %v849 = vsel %vm843, %v848, %v847
        %vm850 = vcmp.lt.s32.totalorder %v682, 0
        %v851 = vsub.s32 0, %v682
        %v852 = vsel %vm850, %v851, %v682
        %v853 = vshrl.u32 %v852, 4
        %v854 = vand.u32 %v852, 15
        %v855 = vsub.s32 0, %v854
        %v856 = vsel %vm850, %v855, %v854
        %vm857 = vcmp.lt.s32.totalorder %v683, 0
        %v858 = vsub.s32 0, %v683
        %v859 = vsel %vm857, %v858, %v683
        %v860 = vshrl.u32 %v859, 4
        %v861 = vand.u32 %v859, 15
        %v862 = vsub.s32 0, %v861
        %v863 = vsel %vm857, %v862, %v861
        %vm864 = vcmp.lt.s32.totalorder %v684, 0
        %v865 = vsub.s32 0, %v684
        %v866 = vsel %vm864, %v865, %v684
        %v867 = vshrl.u32 %v866, 4
        %v868 = vand.u32 %v866, 15
        %v869 = vsub.s32 0, %v868
        %v870 = vsel %vm864, %v869, %v868
        %vm871 = vcmp.lt.s32.totalorder %v685, 0
        %v872 = vsub.s32 0, %v685
        %v873 = vsel %vm871, %v872, %v685
        %v874 = vshrl.u32 %v873, 4
        %v875 = vand.u32 %v873, 15
        %v876 = vsub.s32 0, %v875
        %v877 = vsel %vm871, %v876, %v875
        %vm878 = vcmp.lt.s32.totalorder %v686, 0
        %v879 = vsub.s32 0, %v686
        %v880 = vsel %vm878, %v879, %v686
        %v881 = vshrl.u32 %v880, 4
        %v882 = vand.u32 %v880, 15
        %v883 = vsub.s32 0, %v882
        %v884 = vsel %vm878, %v883, %v882
        %vm885 = vcmp.lt.s32.totalorder %v687, 0
        %v886 = vsub.s32 0, %v687
        %v887 = vsel %vm885, %v886, %v687
        %v888 = vshrl.u32 %v887, 4
        %v889 = vand.u32 %v887, 15
        %v890 = vsub.s32 0, %v889
        %v891 = vsel %vm885, %v890, %v889
        %vm892 = vcmp.lt.s32.totalorder %v688, 0
        %v893 = vsub.s32 0, %v688
        %v894 = vsel %vm892, %v893, %v688
        %v895 = vshrl.u32 %v894, 4
        %v896 = vand.u32 %v894, 15
        %v897 = vsub.s32 0, %v896
        %v898 = vsel %vm892, %v897, %v896
        %vm899 = vcmp.lt.s32.totalorder %v689, 0
        %v900 = vsub.s32 0, %v689
        %v901 = vsel %vm899, %v900, %v689
        %v902 = vshrl.u32 %v901, 4
        %v903 = vand.u32 %v901, 15
        %v904 = vsub.s32 0, %v903
        %v905 = vsel %vm899, %v904, %v903
        %vm906 = vcmp.lt.s32.totalorder %v690, 0
        %v907 = vsub.s32 0, %v690
        %v908 = vsel %vm906, %v907, %v690
        %v909 = vshrl.u32 %v908, 4
        %v910 = vand.u32 %v908, 15
        %v911 = vsub.s32 0, %v910
        %v912 = vsel %vm906, %v911, %v910
        %vm913 = vcmp.lt.s32.totalorder %v691, 0
        %v914 = vsub.s32 0, %v691
        %v915 = vsel %vm913, %v914, %v691
        %v916 = vshrl.u32 %v915, 4
        %v917 = vand.u32 %v915, 15
        %v918 = vsub.s32 0, %v917
        %v919 = vsel %vm913, %v918, %v917
        %vm920 = vcmp.lt.s32.totalorder %v692, 0
        %v921 = vsub.s32 0, %v692
        %v922 = vsel %vm920, %v921, %v692
        %v923 = vshrl.u32 %v922, 4
        %v924 = vand.u32 %v922, 15
        %v925 = vsub.s32 0, %v924
        %v926 = vsel %vm920, %v925, %v924
        %vm927 = vcmp.lt.s32.totalorder %v693, 0
        %v928 = vsub.s32 0, %v693
        %v929 = vsel %vm927, %v928, %v693
        %v930 = vshrl.u32 %v929, 4
        %v931 = vand.u32 %v929, 15
        %v932 = vsub.s32 0, %v931
        %v933 = vsel %vm927, %v932, %v931
        %vm934 = vcmp.lt.s32.totalorder %v694, 0
        %v935 = vsub.s32 0, %v694
        %v936 = vsel %vm934, %v935, %v694
        %v937 = vshrl.u32 %v936, 4
        %v938 = vand.u32 %v936, 15
        %v939 = vsub.s32 0, %v938
        %v940 = vsel %vm934, %v939, %v938
        %vm941 = vcmp.lt.s32.totalorder %v695, 0
        %v942 = vsub.s32 0, %v695
        %v943 = vsel %vm941, %v942, %v695
        %v944 = vshrl.u32 %v943, 4
        %v945 = vand.u32 %v943, 15
        %v946 = vsub.s32 0, %v945
        %v947 = vsel %vm941, %v946, %v945
        %vm948 = vcmp.ne.s32.totalorder %v702, 0
        %vm949 = vcmp.ne.s32.totalorder %v709, 0
        %vm950 = vcmp.ne.s32.totalorder %v716, 0
        %vm951 = vcmp.ne.s32.totalorder %v723, 0
        %vm952 = vcmp.ne.s32.totalorder %v730, 0
        %vm953 = vcmp.ne.s32.totalorder %v737, 0
        %vm954 = vcmp.ne.s32.totalorder %v744, 0
        %vm955 = vcmp.ne.s32.totalorder %v751, 0
        %vm956 = vcmp.ne.s32.totalorder %v758, 0
        %vm957 = vcmp.ne.s32.totalorder %v765, 0
        %vm958 = vcmp.ne.s32.totalorder %v772, 0
        %vm959 = vcmp.ne.s32.totalorder %v779, 0
        %vm960 = vcmp.ne.s32.totalorder %v786, 0
        %vm961 = vcmp.ne.s32.totalorder %v793, 0
        %vm962 = vcmp.ne.s32.totalorder %v800, 0
        %vm963 = vcmp.ne.s32.totalorder %v807, 0
        %vm964 = vcmp.ne.s32.totalorder %v814, 0
        %vm965 = vcmp.ne.s32.totalorder %v821, 0
        %vm966 = vcmp.ne.s32.totalorder %v828, 0
        %vm967 = vcmp.ne.s32.totalorder %v835, 0
        %vm968 = vcmp.ne.s32.totalorder %v842, 0
        %vm969 = vcmp.ne.s32.totalorder %v849, 0
        %vm970 = vcmp.ne.s32.totalorder %v856, 0
        %vm971 = vcmp.ne.s32.totalorder %v863, 0
        %vm972 = vcmp.ne.s32.totalorder %v870, 0
        %vm973 = vcmp.ne.s32.totalorder %v877, 0
        %vm974 = vcmp.ne.s32.totalorder %v884, 0
        %vm975 = vcmp.ne.s32.totalorder %v891, 0
        %vm976 = vcmp.ne.s32.totalorder %v898, 0
        %vm977 = vcmp.ne.s32.totalorder %v905, 0
        %vm978 = vcmp.ne.s32.totalorder %v912, 0
        %vm979 = vcmp.ne.s32.totalorder %v919, 0
        %vm980 = vcmp.ne.s32.totalorder %v926, 0
        %vm981 = vcmp.ne.s32.totalorder %v933, 0
        %vm982 = vcmp.ne.s32.totalorder %v940, 0
        %vm983 = vcmp.ne.s32.totalorder %v947, 0
        %vm984 = vcmp.lt.s32.totalorder %v702, 0
        %vm985 = vcmp.lt.s32.totalorder %v709, 0
        %vm986 = vcmp.lt.s32.totalorder %v716, 0
        %vm987 = vcmp.lt.s32.totalorder %v723, 0
        %vm988 = vcmp.lt.s32.totalorder %v730, 0
        %vm989 = vcmp.lt.s32.totalorder %v737, 0
        %vm990 = vcmp.lt.s32.totalorder %v744, 0
        %vm991 = vcmp.lt.s32.totalorder %v751, 0
        %vm992 = vcmp.lt.s32.totalorder %v758, 0
        %vm993 = vcmp.lt.s32.totalorder %v765, 0
        %vm994 = vcmp.lt.s32.totalorder %v772, 0
        %vm995 = vcmp.lt.s32.totalorder %v779, 0
        %vm996 = vcmp.lt.s32.totalorder %v786, 0
        %vm997 = vcmp.lt.s32.totalorder %v793, 0
        %vm998 = vcmp.lt.s32.totalorder %v800, 0
        %vm999 = vcmp.lt.s32.totalorder %v807, 0
        %vm1000 = vcmp.lt.s32.totalorder %v814, 0
        %vm1001 = vcmp.lt.s32.totalorder %v821, 0
        %vm1002 = vcmp.lt.s32.totalorder %v828, 0
        %vm1003 = vcmp.lt.s32.totalorder %v835, 0
        %vm1004 = vcmp.lt.s32.totalorder %v842, 0
        %vm1005 = vcmp.lt.s32.totalorder %v849, 0
        %vm1006 = vcmp.lt.s32.totalorder %v856, 0
        %vm1007 = vcmp.lt.s32.totalorder %v863, 0
        %vm1008 = vcmp.lt.s32.totalorder %v870, 0
        %vm1009 = vcmp.lt.s32.totalorder %v877, 0
        %vm1010 = vcmp.lt.s32.totalorder %v884, 0
        %vm1011 = vcmp.lt.s32.totalorder %v891, 0
        %vm1012 = vcmp.lt.s32.totalorder %v898, 0
        %vm1013 = vcmp.lt.s32.totalorder %v905, 0
        %vm1014 = vcmp.lt.s32.totalorder %v912, 0
        %vm1015 = vcmp.lt.s32.totalorder %v919, 0
        %vm1016 = vcmp.lt.s32.totalorder %v926, 0
        %vm1017 = vcmp.lt.s32.totalorder %v933, 0
        %vm1018 = vcmp.lt.s32.totalorder %v940, 0
        %vm1019 = vcmp.lt.s32.totalorder %v947, 0
        %vm1020 = vmand %vm984, %vm948
        %vm1021 = vmand %vm985, %vm949
        %vm1022 = vmand %vm986, %vm950
        %vm1023 = vmand %vm987, %vm951
        %vm1024 = vmand %vm988, %vm952
        %vm1025 = vmand %vm989, %vm953
        %vm1026 = vmand %vm990, %vm954
        %vm1027 = vmand %vm991, %vm955
        %vm1028 = vmand %vm992, %vm956
        %vm1029 = vmand %vm993, %vm957
        %vm1030 = vmand %vm994, %vm958
        %vm1031 = vmand %vm995, %vm959
        %vm1032 = vmand %vm996, %vm960
        %vm1033 = vmand %vm997, %vm961
        %vm1034 = vmand %vm998, %vm962
        %vm1035 = vmand %vm999, %vm963
        %vm1036 = vmand %vm1000, %vm964
        %vm1037 = vmand %vm1001, %vm965
        %vm1038 = vmand %vm1002, %vm966
        %vm1039 = vmand %vm1003, %vm967
        %vm1040 = vmand %vm1004, %vm968
        %vm1041 = vmand %vm1005, %vm969
        %vm1042 = vmand %vm1006, %vm970
        %vm1043 = vmand %vm1007, %vm971
        %vm1044 = vmand %vm1008, %vm972
        %vm1045 = vmand %vm1009, %vm973
        %vm1046 = vmand %vm1010, %vm974
        %vm1047 = vmand %vm1011, %vm975
        %vm1048 = vmand %vm1012, %vm976
        %vm1049 = vmand %vm1013, %vm977
        %vm1050 = vmand %vm1014, %vm978
        %vm1051 = vmand %vm1015, %vm979
        %vm1052 = vmand %vm1016, %vm980
        %vm1053 = vmand %vm1017, %vm981
        %vm1054 = vmand %vm1018, %vm982
        %vm1055 = vmand %vm1019, %vm983
        %v1056 = vadd.s32 %v702, 16
        %v1057 = vadd.s32 %v709, 16
        %v1058 = vadd.s32 %v716, 16
        %v1059 = vadd.s32 %v723, 16
        %v1060 = vadd.s32 %v730, 16
        %v1061 = vadd.s32 %v737, 16
        %v1062 = vadd.s32 %v744, 16
        %v1063 = vadd.s32 %v751, 16
        %v1064 = vadd.s32 %v758, 16
        %v1065 = vadd.s32 %v765, 16
        %v1066 = vadd.s32 %v772, 16
        %v1067 = vadd.s32 %v779, 16
        %v1068 = vadd.s32 %v786, 16
        %v1069 = vadd.s32 %v793, 16
        %v1070 = vadd.s32 %v800, 16
        %v1071 = vadd.s32 %v807, 16
        %v1072 = vadd.s32 %v814, 16
        %v1073 = vadd.s32 %v821, 16
        %v1074 = vadd.s32 %v828, 16
        %v1075 = vadd.s32 %v835, 16
        %v1076 = vadd.s32 %v842, 16
        %v1077 = vadd.s32 %v849, 16
        %v1078 = vadd.s32 %v856, 16
        %v1079 = vadd.s32 %v863, 16
        %v1080 = vadd.s32 %v870, 16
        %v1081 = vadd.s32 %v877, 16
        %v1082 = vadd.s32 %v884, 16
        %v1083 = vadd.s32 %v891, 16
        %v1084 = vadd.s32 %v898, 16
        %v1085 = vadd.s32 %v905, 16
        %v1086 = vadd.s32 %v912, 16
        %v1087 = vadd.s32 %v919, 16
        %v1088 = vadd.s32 %v926, 16
        %v1089 = vadd.s32 %v933, 16
        %v1090 = vadd.s32 %v940, 16
        %v1091 = vadd.s32 %v947, 16
        %v1092 = vsel %vm1020, %v1056, %v702
        %v1093 = vsel %vm1021, %v1057, %v709
        %v1094 = vsel %vm1022, %v1058, %v716
        %v1095 = vsel %vm1023, %v1059, %v723
        %v1096 = vsel %vm1024, %v1060, %v730
        %v1097 = vsel %vm1025, %v1061, %v737
        %v1098 = vsel %vm1026, %v1062, %v744
        %v1099 = vsel %vm1027, %v1063, %v751
        %v1100 = vsel %vm1028, %v1064, %v758
        %v1101 = vsel %vm1029, %v1065, %v765
        %v1102 = vsel %vm1030, %v1066, %v772
        %v1103 = vsel %vm1031, %v1067, %v779
        %v1104 = vsel %vm1032, %v1068, %v786
        %v1105 = vsel %vm1033, %v1069, %v793
        %v1106 = vsel %vm1034, %v1070, %v800
        %v1107 = vsel %vm1035, %v1071, %v807
        %v1108 = vsel %vm1036, %v1072, %v814
        %v1109 = vsel %vm1037, %v1073, %v821
        %v1110 = vsel %vm1038, %v1074, %v828
        %v1111 = vsel %vm1039, %v1075, %v835
        %v1112 = vsel %vm1040, %v1076, %v842
        %v1113 = vsel %vm1041, %v1077, %v849
        %v1114 = vsel %vm1042, %v1078, %v856
        %v1115 = vsel %vm1043, %v1079, %v863
        %v1116 = vsel %vm1044, %v1080, %v870
        %v1117 = vsel %vm1045, %v1081, %v877
        %v1118 = vsel %vm1046, %v1082, %v884
        %v1119 = vsel %vm1047, %v1083, %v891
        %v1120 = vsel %vm1048, %v1084, %v898
        %v1121 = vsel %vm1049, %v1085, %v905
        %v1122 = vsel %vm1050, %v1086, %v912
        %v1123 = vsel %vm1051, %v1087, %v919
        %v1124 = vsel %vm1052, %v1088, %v926
        %v1125 = vsel %vm1053, %v1089, %v933
        %v1126 = vsel %vm1054, %v1090, %v940
        %v1127 = vsel %vm1055, %v1091, %v947
        %vm1128 = vcmp.ne.s32.totalorder %v1092, 0
        %vm1129 = vcmp.ne.s32.totalorder %v1093, 0
        %vm1130 = vcmp.ne.s32.totalorder %v1094, 0
        %vm1131 = vcmp.ne.s32.totalorder %v1095, 0
        %vm1132 = vcmp.ne.s32.totalorder %v1096, 0
        %vm1133 = vcmp.ne.s32.totalorder %v1097, 0
        %vm1134 = vcmp.ne.s32.totalorder %v1098, 0
        %vm1135 = vcmp.ne.s32.totalorder %v1099, 0
        %vm1136 = vcmp.ne.s32.totalorder %v1100, 0
        %vm1137 = vcmp.ne.s32.totalorder %v1101, 0
        %vm1138 = vcmp.ne.s32.totalorder %v1102, 0
        %vm1139 = vcmp.ne.s32.totalorder %v1103, 0
        %vm1140 = vcmp.ne.s32.totalorder %v1104, 0
        %vm1141 = vcmp.ne.s32.totalorder %v1105, 0
        %vm1142 = vcmp.ne.s32.totalorder %v1106, 0
        %vm1143 = vcmp.ne.s32.totalorder %v1107, 0
        %vm1144 = vcmp.ne.s32.totalorder %v1108, 0
        %vm1145 = vcmp.ne.s32.totalorder %v1109, 0
        %vm1146 = vcmp.ne.s32.totalorder %v1110, 0
        %vm1147 = vcmp.ne.s32.totalorder %v1111, 0
        %vm1148 = vcmp.ne.s32.totalorder %v1112, 0
        %vm1149 = vcmp.ne.s32.totalorder %v1113, 0
        %vm1150 = vcmp.ne.s32.totalorder %v1114, 0
        %vm1151 = vcmp.ne.s32.totalorder %v1115, 0
        %vm1152 = vcmp.ne.s32.totalorder %v1116, 0
        %vm1153 = vcmp.ne.s32.totalorder %v1117, 0
        %vm1154 = vcmp.ne.s32.totalorder %v1118, 0
        %vm1155 = vcmp.ne.s32.totalorder %v1119, 0
        %vm1156 = vcmp.ne.s32.totalorder %v1120, 0
        %vm1157 = vcmp.ne.s32.totalorder %v1121, 0
        %vm1158 = vcmp.ne.s32.totalorder %v1122, 0
        %vm1159 = vcmp.ne.s32.totalorder %v1123, 0
        %vm1160 = vcmp.ne.s32.totalorder %v1124, 0
        %vm1161 = vcmp.ne.s32.totalorder %v1125, 0
        %vm1162 = vcmp.ne.s32.totalorder %v1126, 0
        %vm1163 = vcmp.ne.s32.totalorder %v1127, 0
        %v1164 = vsel %vm1128, 1, 0
        %v1165 = vsel %vm1129, 1, 0
        %v1166 = vsel %vm1130, 1, 0
        %v1167 = vsel %vm1131, 1, 0
        %v1168 = vsel %vm1132, 1, 0
        %v1169 = vsel %vm1133, 1, 0
        %v1170 = vsel %vm1134, 1, 0
        %v1171 = vsel %vm1135, 1, 0
        %v1172 = vsel %vm1136, 1, 0
        %v1173 = vsel %vm1137, 1, 0
        %v1174 = vsel %vm1138, 1, 0
        %v1175 = vsel %vm1139, 1, 0
        %v1176 = vsel %vm1140, 1, 0
        %v1177 = vsel %vm1141, 1, 0
        %v1178 = vsel %vm1142, 1, 0
        %v1179 = vsel %vm1143, 1, 0
        %v1180 = vsel %vm1144, 1, 0
        %v1181 = vsel %vm1145, 1, 0
        %v1182 = vsel %vm1146, 1, 0
        %v1183 = vsel %vm1147, 1, 0
        %v1184 = vsel %vm1148, 1, 0
        %v1185 = vsel %vm1149, 1, 0
        %v1186 = vsel %vm1150, 1, 0
        %v1187 = vsel %vm1151, 1, 0
        %v1188 = vsel %vm1152, 1, 0
        %v1189 = vsel %vm1153, 1, 0
        %v1190 = vsel %vm1154, 1, 0
        %v1191 = vsel %vm1155, 1, 0
        %v1192 = vsel %vm1156, 1, 0
        %v1193 = vsel %vm1157, 1, 0
        %v1194 = vsel %vm1158, 1, 0
        %v1195 = vsel %vm1159, 1, 0
        %v1196 = vsel %vm1160, 1, 0
        %v1197 = vsel %vm1161, 1, 0
        %v1198 = vsel %vm1162, 1, 0
        %v1199 = vsel %vm1163, 1, 0
        %v1200 = vcvt.s32.f32 %v1164
        %v1201 = vcvt.s32.f32 %v1165
        %v1202 = vcvt.s32.f32 %v1166
        %v1203 = vcvt.s32.f32 %v1167
        %v1204 = vcvt.s32.f32 %v1168
        %v1205 = vcvt.s32.f32 %v1169
        %v1206 = vcvt.s32.f32 %v1170
        %v1207 = vcvt.s32.f32 %v1171
        %v1208 = vcvt.s32.f32 %v1172
        %v1209 = vcvt.s32.f32 %v1173
        %v1210 = vcvt.s32.f32 %v1174
        %v1211 = vcvt.s32.f32 %v1175
        %v1212 = vcvt.s32.f32 %v1176
        %v1213 = vcvt.s32.f32 %v1177
        %v1214 = vcvt.s32.f32 %v1178
        %v1215 = vcvt.s32.f32 %v1179
        %v1216 = vcvt.s32.f32 %v1180
        %v1217 = vcvt.s32.f32 %v1181
        %v1218 = vcvt.s32.f32 %v1182
        %v1219 = vcvt.s32.f32 %v1183
        %v1220 = vcvt.s32.f32 %v1184
        %v1221 = vcvt.s32.f32 %v1185
        %v1222 = vcvt.s32.f32 %v1186
        %v1223 = vcvt.s32.f32 %v1187
        %v1224 = vcvt.s32.f32 %v1188
        %v1225 = vcvt.s32.f32 %v1189
        %v1226 = vcvt.s32.f32 %v1190
        %v1227 = vcvt.s32.f32 %v1191
        %v1228 = vcvt.s32.f32 %v1192
        %v1229 = vcvt.s32.f32 %v1193
        %v1230 = vcvt.s32.f32 %v1194
        %v1231 = vcvt.s32.f32 %v1195
        %v1232 = vcvt.s32.f32 %v1196
        %v1233 = vcvt.s32.f32 %v1197
        %v1234 = vcvt.s32.f32 %v1198
        %v1235 = vcvt.s32.f32 %v1199
        %vm1236 = vcmp.ne.s32.totalorder %v1092, 15
        %vm1237 = vcmp.ne.s32.totalorder %v1093, 15
        %vm1238 = vcmp.ne.s32.totalorder %v1094, 15
        %vm1239 = vcmp.ne.s32.totalorder %v1095, 15
        %vm1240 = vcmp.ne.s32.totalorder %v1096, 15
        %vm1241 = vcmp.ne.s32.totalorder %v1097, 15
        %vm1242 = vcmp.ne.s32.totalorder %v1098, 15
        %vm1243 = vcmp.ne.s32.totalorder %v1099, 15
        %vm1244 = vcmp.ne.s32.totalorder %v1100, 15
        %vm1245 = vcmp.ne.s32.totalorder %v1101, 15
        %vm1246 = vcmp.ne.s32.totalorder %v1102, 15
        %vm1247 = vcmp.ne.s32.totalorder %v1103, 15
        %vm1248 = vcmp.ne.s32.totalorder %v1104, 15
        %vm1249 = vcmp.ne.s32.totalorder %v1105, 15
        %vm1250 = vcmp.ne.s32.totalorder %v1106, 15
        %vm1251 = vcmp.ne.s32.totalorder %v1107, 15
        %vm1252 = vcmp.ne.s32.totalorder %v1108, 15
        %vm1253 = vcmp.ne.s32.totalorder %v1109, 15
        %vm1254 = vcmp.ne.s32.totalorder %v1110, 15
        %vm1255 = vcmp.ne.s32.totalorder %v1111, 15
        %vm1256 = vcmp.ne.s32.totalorder %v1112, 15
        %vm1257 = vcmp.ne.s32.totalorder %v1113, 15
        %vm1258 = vcmp.ne.s32.totalorder %v1114, 15
        %vm1259 = vcmp.ne.s32.totalorder %v1115, 15
        %vm1260 = vcmp.ne.s32.totalorder %v1116, 15
        %vm1261 = vcmp.ne.s32.totalorder %v1117, 15
        %vm1262 = vcmp.ne.s32.totalorder %v1118, 15
        %vm1263 = vcmp.ne.s32.totalorder %v1119, 15
        %vm1264 = vcmp.ne.s32.totalorder %v1120, 15
        %vm1265 = vcmp.ne.s32.totalorder %v1121, 15
        %vm1266 = vcmp.ne.s32.totalorder %v1122, 15
        %vm1267 = vcmp.ne.s32.totalorder %v1123, 15
        %vm1268 = vcmp.ne.s32.totalorder %v1124, 15
        %vm1269 = vcmp.ne.s32.totalorder %v1125, 15
        %vm1270 = vcmp.ne.s32.totalorder %v1126, 15
        %vm1271 = vcmp.ne.s32.totalorder %v1127, 15
        %v1272 = vsel %vm1236, 1, 0
        %v1273 = vsel %vm1237, 1, 0
        %v1274 = vsel %vm1238, 1, 0
        %v1275 = vsel %vm1239, 1, 0
        %v1276 = vsel %vm1240, 1, 0
        %v1277 = vsel %vm1241, 1, 0
        %v1278 = vsel %vm1242, 1, 0
        %v1279 = vsel %vm1243, 1, 0
        %v1280 = vsel %vm1244, 1, 0
        %v1281 = vsel %vm1245, 1, 0
        %v1282 = vsel %vm1246, 1, 0
        %v1283 = vsel %vm1247, 1, 0
        %v1284 = vsel %vm1248, 1, 0
        %v1285 = vsel %vm1249, 1, 0
        %v1286 = vsel %vm1250, 1, 0
        %v1287 = vsel %vm1251, 1, 0
        %v1288 = vsel %vm1252, 1, 0
        %v1289 = vsel %vm1253, 1, 0
        %v1290 = vsel %vm1254, 1, 0
        %v1291 = vsel %vm1255, 1, 0
        %v1292 = vsel %vm1256, 1, 0
        %v1293 = vsel %vm1257, 1, 0
        %v1294 = vsel %vm1258, 1, 0
        %v1295 = vsel %vm1259, 1, 0
        %v1296 = vsel %vm1260, 1, 0
        %v1297 = vsel %vm1261, 1, 0
        %v1298 = vsel %vm1262, 1, 0
        %v1299 = vsel %vm1263, 1, 0
        %v1300 = vsel %vm1264, 1, 0
        %v1301 = vsel %vm1265, 1, 0
        %v1302 = vsel %vm1266, 1, 0
        %v1303 = vsel %vm1267, 1, 0
        %v1304 = vsel %vm1268, 1, 0
        %v1305 = vsel %vm1269, 1, 0
        %v1306 = vsel %vm1270, 1, 0
        %v1307 = vsel %vm1271, 1, 0
        %v1308 = vcvt.s32.f32 %v1272
        %v1309 = vcvt.s32.f32 %v1273
        %v1310 = vcvt.s32.f32 %v1274
        %v1311 = vcvt.s32.f32 %v1275
        %v1312 = vcvt.s32.f32 %v1276
        %v1313 = vcvt.s32.f32 %v1277
        %v1314 = vcvt.s32.f32 %v1278
        %v1315 = vcvt.s32.f32 %v1279
        %v1316 = vcvt.s32.f32 %v1280
        %v1317 = vcvt.s32.f32 %v1281
        %v1318 = vcvt.s32.f32 %v1282
        %v1319 = vcvt.s32.f32 %v1283
        %v1320 = vcvt.s32.f32 %v1284
        %v1321 = vcvt.s32.f32 %v1285
        %v1322 = vcvt.s32.f32 %v1286
        %v1323 = vcvt.s32.f32 %v1287
        %v1324 = vcvt.s32.f32 %v1288
        %v1325 = vcvt.s32.f32 %v1289
        %v1326 = vcvt.s32.f32 %v1290
        %v1327 = vcvt.s32.f32 %v1291
        %v1328 = vcvt.s32.f32 %v1292
        %v1329 = vcvt.s32.f32 %v1293
        %v1330 = vcvt.s32.f32 %v1294
        %v1331 = vcvt.s32.f32 %v1295
        %v1332 = vcvt.s32.f32 %v1296
        %v1333 = vcvt.s32.f32 %v1297
        %v1334 = vcvt.s32.f32 %v1298
        %v1335 = vcvt.s32.f32 %v1299
        %v1336 = vcvt.s32.f32 %v1300
        %v1337 = vcvt.s32.f32 %v1301
        %v1338 = vcvt.s32.f32 %v1302
        %v1339 = vcvt.s32.f32 %v1303
        %v1340 = vcvt.s32.f32 %v1304
        %v1341 = vcvt.s32.f32 %v1305
        %v1342 = vcvt.s32.f32 %v1306
        %v1343 = vcvt.s32.f32 %v1307
        %vm1380 = vcmask 1040384
        %v1381 = vrot.slane %v654, 7
        %v1382 = vrot.slane %v655, 7
        %v1383 = vsel %vm1380, %v1381, %v1382
        %v1384 = vrot.slane %v580, 7
        %v1385 = vsel %vm1380, %v1382, %v1384
        %v1386 = vrot.slane %v581, 7
        %v1387 = vsel %vm1380, %v1384, %v1386
        %v1388 = vrot.slane %v582, 7
        %v1389 = vsel %vm1380, %v1386, %v1388
        %v1390 = vrot.slane %v583, 7
        %v1391 = vsel %vm1380, %v1388, %v1390
        %v1392 = vrot.slane %v584, 7
        %v1393 = vsel %vm1380, %v1390, %v1392
        %v1394 = vrot.slane %v585, 7
        %v1395 = vsel %vm1380, %v1392, %v1394
        %v1396 = vrot.slane %v586, 7
        %v1397 = vsel %vm1380, %v1394, %v1396
        %v1398 = vrot.slane %v587, 7
        %v1399 = vsel %vm1380, %v1396, %v1398
        %v1400 = vrot.slane %v588, 7
        %v1401 = vsel %vm1380, %v1398, %v1400
        %v1402 = vrot.slane %v589, 7
        %v1403 = vsel %vm1380, %v1400, %v1402
        %v1404 = vrot.slane %v590, 7
        %v1405 = vsel %vm1380, %v1402, %v1404
        %v1406 = vrot.slane %v591, 7
        %v1407 = vsel %vm1380, %v1404, %v1406
        %v1408 = vrot.slane %v592, 7
        %v1409 = vsel %vm1380, %v1406, %v1408
        %v1410 = vrot.slane %v593, 7
        %v1411 = vsel %vm1380, %v1408, %v1410
        %v1412 = vrot.slane %v594, 7
        %v1413 = vsel %vm1380, %v1410, %v1412
        %v1414 = vrot.slane %v595, 7
        %v1415 = vsel %vm1380, %v1412, %v1414
        %v1416 = vrot.slane %v596, 7
        %v1417 = vsel %vm1380, %v1414, %v1416
        %v1418 = vrot.slane %v597, 7
        %v1419 = vsel %vm1380, %v1416, %v1418
        %v1420 = vrot.slane %v598, 7
        %v1421 = vsel %vm1380, %v1418, %v1420
        %v1422 = vrot.slane %v599, 7
        %v1423 = vsel %vm1380, %v1420, %v1422
        %v1424 = vrot.slane %v600, 7
        %v1425 = vsel %vm1380, %v1422, %v1424
        %v1426 = vrot.slane %v601, 7
        %v1427 = vsel %vm1380, %v1424, %v1426
        %v1428 = vrot.slane %v602, 7
        %v1429 = vsel %vm1380, %v1426, %v1428
        %v1430 = vrot.slane %v603, 7
        %v1431 = vsel %vm1380, %v1428, %v1430
        %v1432 = vrot.slane %v604, 7
        %v1433 = vsel %vm1380, %v1430, %v1432
        %v1434 = vrot.slane %v605, 7
        %v1435 = vsel %vm1380, %v1432, %v1434
        %v1436 = vrot.slane %v606, 7
        %v1437 = vsel %vm1380, %v1434, %v1436
        %v1438 = vrot.slane %v607, 7
        %v1439 = vsel %vm1380, %v1436, %v1438
        %v1440 = vrot.slane %v608, 7
        %v1441 = vsel %vm1380, %v1438, %v1440
        %v1442 = vrot.slane %v609, 7
        %v1443 = vsel %vm1380, %v1440, %v1442
        %v1444 = vrot.slane %v610, 7
        %v1445 = vsel %vm1380, %v1442, %v1444
        %v1446 = vrot.slane %v611, 7
        %v1447 = vsel %vm1380, %v1444, %v1446
        %v1448 = vrot.slane %v657, 7
        %v1449 = vsel %vm1380, %v1446, %v1448
        %v1450 = vrot.slane %v658, 7
        %v1451 = vsel %vm1380, %v1448, %v1450
        %v1488 = vsel %vm1380, 0.0, %v1381
        %v1489 = vmul.f32 %v1488, %v1200
        %v1490 = vmul.f32 %v1383, %v1201
        %v1491 = vmul.f32 %v1385, %v1202
        %v1492 = vmul.f32 %v1387, %v1203
        %v1493 = vmul.f32 %v1389, %v1204
        %v1494 = vmul.f32 %v1391, %v1205
        %v1495 = vmul.f32 %v1393, %v1206
        %v1496 = vmul.f32 %v1395, %v1207
        %v1497 = vmul.f32 %v1397, %v1208
        %v1498 = vmul.f32 %v1399, %v1209
        %v1499 = vmul.f32 %v1401, %v1210
        %v1500 = vmul.f32 %v1403, %v1211
        %v1501 = vmul.f32 %v1405, %v1212
        %v1502 = vmul.f32 %v1407, %v1213
        %v1503 = vmul.f32 %v1409, %v1214
        %v1504 = vmul.f32 %v1411, %v1215
        %v1505 = vmul.f32 %v1413, %v1216
        %v1506 = vmul.f32 %v1415, %v1217
        %v1507 = vmul.f32 %v1417, %v1218
        %v1508 = vmul.f32 %v1419, %v1219
        %v1509 = vmul.f32 %v1421, %v1220
        %v1510 = vmul.f32 %v1423, %v1221
        %v1511 = vmul.f32 %v1425, %v1222
        %v1512 = vmul.f32 %v1427, %v1223
        %v1513 = vmul.f32 %v1429, %v1224
        %v1514 = vmul.f32 %v1431, %v1225
        %v1515 = vmul.f32 %v1433, %v1226
        %v1516 = vmul.f32 %v1435, %v1227
        %v1517 = vmul.f32 %v1437, %v1228
        %v1518 = vmul.f32 %v1439, %v1229
        %v1519 = vmul.f32 %v1441, %v1230
        %v1520 = vmul.f32 %v1443, %v1231
        %v1521 = vmul.f32 %v1445, %v1232
        %v1522 = vmul.f32 %v1447, %v1233
        %v1523 = vmul.f32 %v1449, %v1234
        %v1524 = vmul.f32 %v1451, %v1235
        %vm1525 = vcmask 1046528
        %v1526 = vrot.slane %v654, 1
        %v1527 = vrot.slane %v655, 1
        %v1528 = vsel %vm1525, %v1526, %v1527
        %v1529 = vrot.slane %v580, 1
        %v1530 = vsel %vm1525, %v1527, %v1529
        %v1531 = vrot.slane %v581, 1
        %v1532 = vsel %vm1525, %v1529, %v1531
        %v1533 = vrot.slane %v582, 1
        %v1534 = vsel %vm1525, %v1531, %v1533
        %v1535 = vrot.slane %v583, 1
        %v1536 = vsel %vm1525, %v1533, %v1535
        %v1537 = vrot.slane %v584, 1
        %v1538 = vsel %vm1525, %v1535, %v1537
        %v1539 = vrot.slane %v585, 1
        %v1540 = vsel %vm1525, %v1537, %v1539
        %v1541 = vrot.slane %v586, 1
        %v1542 = vsel %vm1525, %v1539, %v1541
        %v1543 = vrot.slane %v587, 1
        %v1544 = vsel %vm1525, %v1541, %v1543
        %v1545 = vrot.slane %v588, 1
        %v1546 = vsel %vm1525, %v1543, %v1545
        %v1547 = vrot.slane %v589, 1
        %v1548 = vsel %vm1525, %v1545, %v1547
        %v1549 = vrot.slane %v590, 1
        %v1550 = vsel %vm1525, %v1547, %v1549
        %v1551 = vrot.slane %v591, 1
        %v1552 = vsel %vm1525, %v1549, %v1551
        %v1553 = vrot.slane %v592, 1
        %v1554 = vsel %vm1525, %v1551, %v1553
        %v1555 = vrot.slane %v593, 1
        %v1556 = vsel %vm1525, %v1553, %v1555
        %v1557 = vrot.slane %v594, 1
        %v1558 = vsel %vm1525, %v1555, %v1557
        %v1559 = vrot.slane %v595, 1
        %v1560 = vsel %vm1525, %v1557, %v1559
        %v1561 = vrot.slane %v596, 1
        %v1562 = vsel %vm1525, %v1559, %v1561
        %v1563 = vrot.slane %v597, 1
        %v1564 = vsel %vm1525, %v1561, %v1563
        %v1565 = vrot.slane %v598, 1
        %v1566 = vsel %vm1525, %v1563, %v1565
        %v1567 = vrot.slane %v599, 1
        %v1568 = vsel %vm1525, %v1565, %v1567
        %v1569 = vrot.slane %v600, 1
        %v1570 = vsel %vm1525, %v1567, %v1569
        %v1571 = vrot.slane %v601, 1
        %v1572 = vsel %vm1525, %v1569, %v1571
        %v1573 = vrot.slane %v602, 1
        %v1574 = vsel %vm1525, %v1571, %v1573
        %v1575 = vrot.slane %v603, 1
        %v1576 = vsel %vm1525, %v1573, %v1575
        %v1577 = vrot.slane %v604, 1
        %v1578 = vsel %vm1525, %v1575, %v1577
        %v1579 = vrot.slane %v605, 1
        %v1580 = vsel %vm1525, %v1577, %v1579
        %v1581 = vrot.slane %v606, 1
        %v1582 = vsel %vm1525, %v1579, %v1581
        %v1583 = vrot.slane %v607, 1
        %v1584 = vsel %vm1525, %v1581, %v1583
        %v1585 = vrot.slane %v608, 1
        %v1586 = vsel %vm1525, %v1583, %v1585
        %v1587 = vrot.slane %v609, 1
        %v1588 = vsel %vm1525, %v1585, %v1587
        %v1589 = vrot.slane %v610, 1
        %v1590 = vsel %vm1525, %v1587, %v1589
        %v1591 = vrot.slane %v611, 1
        %v1592 = vsel %vm1525, %v1589, %v1591
        %v1593 = vrot.slane %v657, 1
        %v1594 = vsel %vm1525, %v1591, %v1593
        %v1595 = vrot.slane %v658, 1
        %v1596 = vsel %vm1525, %v1593, %v1595
        %v1633 = vsel %vm1525, %v1595, 0.0
        %v1634 = vmul.f32 %v1528, %v1308
        %v1635 = vmul.f32 %v1530, %v1309
        %v1636 = vmul.f32 %v1532, %v1310
        %v1637 = vmul.f32 %v1534, %v1311
        %v1638 = vmul.f32 %v1536, %v1312
        %v1639 = vmul.f32 %v1538, %v1313
        %v1640 = vmul.f32 %v1540, %v1314
        %v1641 = vmul.f32 %v1542, %v1315
        %v1642 = vmul.f32 %v1544, %v1316
        %v1643 = vmul.f32 %v1546, %v1317
        %v1644 = vmul.f32 %v1548, %v1318
        %v1645 = vmul.f32 %v1550, %v1319
        %v1646 = vmul.f32 %v1552, %v1320
        %v1647 = vmul.f32 %v1554, %v1321
        %v1648 = vmul.f32 %v1556, %v1322
        %v1649 = vmul.f32 %v1558, %v1323
        %v1650 = vmul.f32 %v1560, %v1324
        %v1651 = vmul.f32 %v1562, %v1325
        %v1652 = vmul.f32 %v1564, %v1326
        %v1653 = vmul.f32 %v1566, %v1327
        %v1654 = vmul.f32 %v1568, %v1328
        %v1655 = vmul.f32 %v1570, %v1329
        %v1656 = vmul.f32 %v1572, %v1330
        %v1657 = vmul.f32 %v1574, %v1331
        %v1658 = vmul.f32 %v1576, %v1332
        %v1659 = vmul.f32 %v1578, %v1333
        %v1660 = vmul.f32 %v1580, %v1334
        %v1661 = vmul.f32 %v1582, %v1335
        %v1662 = vmul.f32 %v1584, %v1336
        %v1663 = vmul.f32 %v1586, %v1337
        %v1664 = vmul.f32 %v1588, %v1338
        %v1665 = vmul.f32 %v1590, %v1339
        %v1666 = vmul.f32 %v1592, %v1340
        %v1667 = vmul.f32 %v1594, %v1341
        %v1668 = vmul.f32 %v1596, %v1342
        %v1669 = vmul.f32 %v1633, %v1343
        %1670 = vrot.lane.b32.xlu0 %v654, 4
        %v1671 = vpop.permute.xlu0 %1670
        %1672 = vrot.lane.b32.xlu0 %v655, 4
        %v1673 = vpop.permute.xlu0 %1672
        %1674 = vrot.lane.b32.xlu0 %v580, 4
        %v1675 = vpop.permute.xlu0 %1674
        %1676 = vrot.lane.b32.xlu0 %v581, 4
        %v1677 = vpop.permute.xlu0 %1676
        %1678 = vrot.lane.b32.xlu0 %v582, 4
        %v1679 = vpop.permute.xlu0 %1678
        %1680 = vrot.lane.b32.xlu0 %v583, 4
        %v1681 = vpop.permute.xlu0 %1680
        %1682 = vrot.lane.b32.xlu0 %v584, 4
        %v1683 = vpop.permute.xlu0 %1682
        %1684 = vrot.lane.b32.xlu0 %v585, 4
        %v1685 = vpop.permute.xlu0 %1684
        %1686 = vrot.lane.b32.xlu0 %v586, 4
        %v1687 = vpop.permute.xlu0 %1686
        %1688 = vrot.lane.b32.xlu0 %v587, 4
        %v1689 = vpop.permute.xlu0 %1688
        %1690 = vrot.lane.b32.xlu0 %v588, 4
        %v1691 = vpop.permute.xlu0 %1690
        %1692 = vrot.lane.b32.xlu0 %v589, 4
        %v1693 = vpop.permute.xlu0 %1692
        %1694 = vrot.lane.b32.xlu0 %v590, 4
        %v1695 = vpop.permute.xlu0 %1694
        %1696 = vrot.lane.b32.xlu0 %v591, 4
        %v1697 = vpop.permute.xlu0 %1696
        %1698 = vrot.lane.b32.xlu0 %v592, 4
        %v1699 = vpop.permute.xlu0 %1698
        %1700 = vrot.lane.b32.xlu0 %v593, 4
        %v1701 = vpop.permute.xlu0 %1700
        %1702 = vrot.lane.b32.xlu0 %v594, 4
        %v1703 = vpop.permute.xlu0 %1702
        %1704 = vrot.lane.b32.xlu0 %v595, 4
        %v1705 = vpop.permute.xlu0 %1704
        %1706 = vrot.lane.b32.xlu0 %v596, 4
        %v1707 = vpop.permute.xlu0 %1706
        %1708 = vrot.lane.b32.xlu0 %v597, 4
        %v1709 = vpop.permute.xlu0 %1708
        %1710 = vrot.lane.b32.xlu0 %v598, 4
        %v1711 = vpop.permute.xlu0 %1710
        %1712 = vrot.lane.b32.xlu0 %v599, 4
        %v1713 = vpop.permute.xlu0 %1712
        %1714 = vrot.lane.b32.xlu0 %v600, 4
        %v1715 = vpop.permute.xlu0 %1714
        %1716 = vrot.lane.b32.xlu0 %v601, 4
        %v1717 = vpop.permute.xlu0 %1716
        %1718 = vrot.lane.b32.xlu0 %v602, 4
        %v1719 = vpop.permute.xlu0 %1718
        %1720 = vrot.lane.b32.xlu0 %v603, 4
        %v1721 = vpop.permute.xlu0 %1720
        %1722 = vrot.lane.b32.xlu0 %v604, 4
        %v1723 = vpop.permute.xlu0 %1722
        %1724 = vrot.lane.b32.xlu0 %v605, 4
        %v1725 = vpop.permute.xlu0 %1724
        %1726 = vrot.lane.b32.xlu0 %v606, 4
        %v1727 = vpop.permute.xlu0 %1726
        %1728 = vrot.lane.b32.xlu0 %v607, 4
        %v1729 = vpop.permute.xlu0 %1728
        %1730 = vrot.lane.b32.xlu0 %v608, 4
        %v1731 = vpop.permute.xlu0 %1730
        %1732 = vrot.lane.b32.xlu0 %v609, 4
        %v1733 = vpop.permute.xlu0 %1732
        %1734 = vrot.lane.b32.xlu0 %v610, 4
        %v1735 = vpop.permute.xlu0 %1734
        %1736 = vrot.lane.b32.xlu0 %v611, 4
        %v1737 = vpop.permute.xlu0 %1736
        %1738 = vrot.lane.b32.xlu0 %v657, 4
        %v1739 = vpop.permute.xlu0 %1738
        %1740 = vrot.lane.b32.xlu0 %v658, 4
        %v1741 = vpop.permute.xlu0 %1740
        %1814 = vrot.lane.b32.xlu0 %v1634, 8
        %v1815 = vpop.permute.xlu0 %1814
        %1816 = vrot.lane.b32.xlu0 %v1635, 8
        %v1817 = vpop.permute.xlu0 %1816
        %1818 = vrot.lane.b32.xlu0 %v1636, 8
        %v1819 = vpop.permute.xlu0 %1818
        %1820 = vrot.lane.b32.xlu0 %v1637, 8
        %v1821 = vpop.permute.xlu0 %1820
        %1822 = vrot.lane.b32.xlu0 %v1638, 8
        %v1823 = vpop.permute.xlu0 %1822
        %1824 = vrot.lane.b32.xlu0 %v1639, 8
        %v1825 = vpop.permute.xlu0 %1824
        %1826 = vrot.lane.b32.xlu0 %v1640, 8
        %v1827 = vpop.permute.xlu0 %1826
        %1828 = vrot.lane.b32.xlu0 %v1641, 8
        %v1829 = vpop.permute.xlu0 %1828
        %1830 = vrot.lane.b32.xlu0 %v1642, 8
        %v1831 = vpop.permute.xlu0 %1830
        %1832 = vrot.lane.b32.xlu0 %v1643, 8
        %v1833 = vpop.permute.xlu0 %1832
        %1834 = vrot.lane.b32.xlu0 %v1644, 8
        %v1835 = vpop.permute.xlu0 %1834
        %1836 = vrot.lane.b32.xlu0 %v1645, 8
        %v1837 = vpop.permute.xlu0 %1836
        %1838 = vrot.lane.b32.xlu0 %v1646, 8
        %v1839 = vpop.permute.xlu0 %1838
        %1840 = vrot.lane.b32.xlu0 %v1647, 8
        %v1841 = vpop.permute.xlu0 %1840
        %1842 = vrot.lane.b32.xlu0 %v1648, 8
        %v1843 = vpop.permute.xlu0 %1842
        %1844 = vrot.lane.b32.xlu0 %v1649, 8
        %v1845 = vpop.permute.xlu0 %1844
        %1846 = vrot.lane.b32.xlu0 %v1650, 8
        %v1847 = vpop.permute.xlu0 %1846
        %1848 = vrot.lane.b32.xlu0 %v1651, 8
        %v1849 = vpop.permute.xlu0 %1848
        %1850 = vrot.lane.b32.xlu0 %v1652, 8
        %v1851 = vpop.permute.xlu0 %1850
        %1852 = vrot.lane.b32.xlu0 %v1653, 8
        %v1853 = vpop.permute.xlu0 %1852
        %1854 = vrot.lane.b32.xlu0 %v1654, 8
        %v1855 = vpop.permute.xlu0 %1854
        %1856 = vrot.lane.b32.xlu0 %v1655, 8
        %v1857 = vpop.permute.xlu0 %1856
        %1858 = vrot.lane.b32.xlu0 %v1656, 8
        %v1859 = vpop.permute.xlu0 %1858
        %1860 = vrot.lane.b32.xlu0 %v1657, 8
        %v1861 = vpop.permute.xlu0 %1860
        %1862 = vrot.lane.b32.xlu0 %v1658, 8
        %v1863 = vpop.permute.xlu0 %1862
        %1864 = vrot.lane.b32.xlu0 %v1659, 8
        %v1865 = vpop.permute.xlu0 %1864
        %1866 = vrot.lane.b32.xlu0 %v1660, 8
        %v1867 = vpop.permute.xlu0 %1866
        %1868 = vrot.lane.b32.xlu0 %v1661, 8
        %v1869 = vpop.permute.xlu0 %1868
        %1870 = vrot.lane.b32.xlu0 %v1662, 8
        %v1871 = vpop.permute.xlu0 %1870
        %1872 = vrot.lane.b32.xlu0 %v1663, 8
        %v1873 = vpop.permute.xlu0 %1872
        %1874 = vrot.lane.b32.xlu0 %v1664, 8
        %v1875 = vpop.permute.xlu0 %1874
        %1876 = vrot.lane.b32.xlu0 %v1665, 8
        %v1877 = vpop.permute.xlu0 %1876
        %1878 = vrot.lane.b32.xlu0 %v1666, 8
        %v1879 = vpop.permute.xlu0 %1878
        %1880 = vrot.lane.b32.xlu0 %v1667, 8
        %v1881 = vpop.permute.xlu0 %1880
        %1882 = vrot.lane.b32.xlu0 %v1668, 8
        %v1883 = vpop.permute.xlu0 %1882
        %1884 = vrot.lane.b32.xlu0 %v1669, 8
        %v1885 = vpop.permute.xlu0 %1884
        %vm1922 = vcmask 31744
        %v1923 = vsel %vm1922, %v1489, %v1671
        %v1924 = vsel %vm1922, %v1490, %v1673
        %v1925 = vsel %vm1922, %v1491, %v1675
        %v1926 = vsel %vm1922, %v1492, %v1677
        %v1927 = vsel %vm1922, %v1493, %v1679
        %v1928 = vsel %vm1922, %v1494, %v1681
        %v1929 = vsel %vm1922, %v1495, %v1683
        %v1930 = vsel %vm1922, %v1496, %v1685
        %v1931 = vsel %vm1922, %v1497, %v1687
        %v1932 = vsel %vm1922, %v1498, %v1689
        %v1933 = vsel %vm1922, %v1499, %v1691
        %v1934 = vsel %vm1922, %v1500, %v1693
        %v1935 = vsel %vm1922, %v1501, %v1695
        %v1936 = vsel %vm1922, %v1502, %v1697
        %v1937 = vsel %vm1922, %v1503, %v1699
        %v1938 = vsel %vm1922, %v1504, %v1701
        %v1939 = vsel %vm1922, %v1505, %v1703
        %v1940 = vsel %vm1922, %v1506, %v1705
        %v1941 = vsel %vm1922, %v1507, %v1707
        %v1942 = vsel %vm1922, %v1508, %v1709
        %v1943 = vsel %vm1922, %v1509, %v1711
        %v1944 = vsel %vm1922, %v1510, %v1713
        %v1945 = vsel %vm1922, %v1511, %v1715
        %v1946 = vsel %vm1922, %v1512, %v1717
        %v1947 = vsel %vm1922, %v1513, %v1719
        %v1948 = vsel %vm1922, %v1514, %v1721
        %v1949 = vsel %vm1922, %v1515, %v1723
        %v1950 = vsel %vm1922, %v1516, %v1725
        %v1951 = vsel %vm1922, %v1517, %v1727
        %v1952 = vsel %vm1922, %v1518, %v1729
        %v1953 = vsel %vm1922, %v1519, %v1731
        %v1954 = vsel %vm1922, %v1520, %v1733
        %v1955 = vsel %vm1922, %v1521, %v1735
        %v1956 = vsel %vm1922, %v1522, %v1737
        %v1957 = vsel %vm1922, %v1523, %v1739
        %v1958 = vsel %vm1922, %v1524, %v1741
        %vm1959 = vcmask 64512
        %v1960 = vsel %vm1959, %v1923, %v1815
        %v1961 = vsel %vm1959, %v1924, %v1817
        %v1962 = vsel %vm1959, %v1925, %v1819
        %v1963 = vsel %vm1959, %v1926, %v1821
        %v1964 = vsel %vm1959, %v1927, %v1823
        %v1965 = vsel %vm1959, %v1928, %v1825
        %v1966 = vsel %vm1959, %v1929, %v1827
        %v1967 = vsel %vm1959, %v1930, %v1829
        %v1968 = vsel %vm1959, %v1931, %v1831
        %v1969 = vsel %vm1959, %v1932, %v1833
        %v1970 = vsel %vm1959, %v1933, %v1835
        %v1971 = vsel %vm1959, %v1934, %v1837
        %v1972 = vsel %vm1959, %v1935, %v1839
        %v1973 = vsel %vm1959, %v1936, %v1841
        %v1974 = vsel %vm1959, %v1937, %v1843
        %v1975 = vsel %vm1959, %v1938, %v1845
        %v1976 = vsel %vm1959, %v1939, %v1847
        %v1977 = vsel %vm1959, %v1940, %v1849
        %v1978 = vsel %vm1959, %v1941, %v1851
        %v1979 = vsel %vm1959, %v1942, %v1853
        %v1980 = vsel %vm1959, %v1943, %v1855
        %v1981 = vsel %vm1959, %v1944, %v1857
        %v1982 = vsel %vm1959, %v1945, %v1859
        %v1983 = vsel %vm1959, %v1946, %v1861
        %v1984 = vsel %vm1959, %v1947, %v1863
        %v1985 = vsel %vm1959, %v1948, %v1865
        %v1986 = vsel %vm1959, %v1949, %v1867
        %v1987 = vsel %vm1959, %v1950, %v1869
        %v1988 = vsel %vm1959, %v1951, %v1871
        %v1989 = vsel %vm1959, %v1952, %v1873
        %v1990 = vsel %vm1959, %v1953, %v1875
        %v1991 = vsel %vm1959, %v1954, %v1877
        %v1992 = vsel %vm1959, %v1955, %v1879
        %v1993 = vsel %vm1959, %v1956, %v1881
        %v1994 = vsel %vm1959, %v1957, %v1883
        %v1995 = vsel %vm1959, %v1958, %v1885
        %v1996 = vpack.c.bf16 %v1961, %v1960
        %v1997 = vpack.c.bf16 %v1963, %v1962
        %v1998 = vpack.c.bf16 %v1965, %v1964
        %v1999 = vpack.c.bf16 %v1967, %v1966
        %v2000 = vpack.c.bf16 %v1969, %v1968
        %v2001 = vpack.c.bf16 %v1971, %v1970
        %v2002 = vpack.c.bf16 %v1973, %v1972
        %v2003 = vpack.c.bf16 %v1975, %v1974
        %v2004 = vpack.c.bf16 %v1977, %v1976
        %v2005 = vpack.c.bf16 %v1979, %v1978
        %v2006 = vpack.c.bf16 %v1981, %v1980
        %v2007 = vpack.c.bf16 %v1983, %v1982
        %v2008 = vpack.c.bf16 %v1985, %v1984
        %v2009 = vpack.c.bf16 %v1987, %v1986
        %v2010 = vpack.c.bf16 %v1989, %v1988
        %v2011 = vpack.c.bf16 %v1991, %v1990
        %v2012 = vld [vmem:[%s4] sm:$0xf]
        %v2013 = vld [vmem:[%s4 + $0x4] sm:$0x3]
        %v2014 = vpack.c.bf16 %v1993, %v1992
        %s2015 = scalar_lea.vmem %s4, 8
        %v2016 = vld [vmem:[%s2015] sm:$0xf]
        %v2017 = vld [vmem:[%s2015 + $0x4] sm:$0x3]
        %v2020 = vunpack.c.l.b16 %v2016
        %v2021 = vunpack.c.l.b16 %v2017
        %v2022 = vpack.c.b16 %v2021, %v2020
        %vm2023 = vcmask 97280
        %v2025 = vsel %vm2023, %v1997, 0
        %v2028 = vsel %vm2023, %v1998, 0
        %v2031 = vsel %vm2023, %v1999, 0
        %v2034 = vsel %vm2023, %v2000, 0
        %v2037 = vsel %vm2023, %v2001, 0
        %v2040 = vsel %vm2023, %v2002, 0
        %v2043 = vsel %vm2023, %v2003, 0
        %v2046 = vsel %vm2023, %v2004, 0
        %v2049 = vsel %vm2023, %v2005, 0
        %v2052 = vsel %vm2023, %v2006, 0
        %v2055 = vsel %vm2023, %v2007, 0
        %v2058 = vsel %vm2023, %v2008, 0
        %v2061 = vsel %vm2023, %v2009, 0
        %v2064 = vsel %vm2023, %v2010, 0
        %v2067 = vsel %vm2023, %v2011, 0
        %v2070 = vsel %vm2023, %v2014, 0
        %vm2072 = vcmask 1045504
        %v2074 = vsel %vm2072, %v2022, 0
        %2076 = vmatpush.bf16.msra.mxu0 0
        %2077 = vmatpush.bf16.msra.mxu0 0
        %2078 = vmatpush.bf16.msra.mxu0 0
        %2079 = vmatpush.bf16.msra.mxu0 0
        %2080 = vmatpush.bf16.msra.mxu0 0
        %2081 = vmatpush.bf16.msra.mxu0 0
        %2082 = vmatpush.bf16.msra.mxu0 0
        %2083 = vmatpush.bf16.msra.mxu0 %v2074
        %2084 = vmatmul.bf16.gmra.mxu0 %v2025
        %v2085 = vpop.f32.mrf.mxu0
        %v2086 = vadd.f32 0.0, %v2085
        %v2087 = vpop.f32.mrf.mxu0
        %v2088 = vadd.f32 0.0, %v2087
        %2089 = vmatmul.bf16.gmra.mxu0 %v2028
        %v2090 = vpop.f32.mrf.mxu0
        %v2091 = vadd.f32 0.0, %v2090
        %v2092 = vpop.f32.mrf.mxu0
        %v2093 = vadd.f32 0.0, %v2092
        %2094 = vmatmul.bf16.gmra.mxu0 %v2031
        %v2095 = vpop.f32.mrf.mxu0
        %v2096 = vadd.f32 0.0, %v2095
        %v2097 = vpop.f32.mrf.mxu0
        %v2098 = vadd.f32 0.0, %v2097
        %2099 = vmatmul.bf16.gmra.mxu0 %v2034
        %v2100 = vpop.f32.mrf.mxu0
        %v2101 = vadd.f32 0.0, %v2100
        %v2102 = vpop.f32.mrf.mxu0
        %v2103 = vadd.f32 0.0, %v2102
        %2104 = vmatmul.bf16.gmra.mxu0 %v2037
        %v2105 = vpop.f32.mrf.mxu0
        %v2106 = vadd.f32 0.0, %v2105
        %v2107 = vpop.f32.mrf.mxu0
        %v2108 = vadd.f32 0.0, %v2107
        %2109 = vmatmul.bf16.gmra.mxu0 %v2040
        %v2110 = vpop.f32.mrf.mxu0
        %v2111 = vadd.f32 0.0, %v2110
        %v2112 = vpop.f32.mrf.mxu0
        %v2113 = vadd.f32 0.0, %v2112
        %2114 = vmatmul.bf16.gmra.mxu0 %v2043
        %v2115 = vpop.f32.mrf.mxu0
        %v2116 = vadd.f32 0.0, %v2115
        %v2117 = vpop.f32.mrf.mxu0
        %v2118 = vadd.f32 0.0, %v2117
        %2119 = vmatmul.bf16.gmra.mxu0 %v2046
        %v2120 = vpop.f32.mrf.mxu0
        %v2121 = vadd.f32 0.0, %v2120
        %v2122 = vpop.f32.mrf.mxu0
        %v2123 = vadd.f32 0.0, %v2122
        %2124 = vmatmul.bf16.gmra.mxu0 %v2049
        %v2125 = vpop.f32.mrf.mxu0
        %v2126 = vadd.f32 0.0, %v2125
        %v2127 = vpop.f32.mrf.mxu0
        %v2128 = vadd.f32 0.0, %v2127
        %2129 = vmatmul.bf16.gmra.mxu0 %v2052
        %v2130 = vpop.f32.mrf.mxu0
        %v2131 = vadd.f32 0.0, %v2130
        %v2132 = vpop.f32.mrf.mxu0
        %v2133 = vadd.f32 0.0, %v2132
        %2134 = vmatmul.bf16.gmra.mxu0 %v2055
        %v2135 = vpop.f32.mrf.mxu0
        %v2136 = vadd.f32 0.0, %v2135
        %v2137 = vpop.f32.mrf.mxu0
        %v2138 = vadd.f32 0.0, %v2137
        %2139 = vmatmul.bf16.gmra.mxu0 %v2058
        %v2140 = vpop.f32.mrf.mxu0
        %v2141 = vadd.f32 0.0, %v2140
        %v2142 = vpop.f32.mrf.mxu0
        %v2143 = vadd.f32 0.0, %v2142
        %2144 = vmatmul.bf16.gmra.mxu0 %v2061
        %v2145 = vpop.f32.mrf.mxu0
        %v2146 = vadd.f32 0.0, %v2145
        %v2147 = vpop.f32.mrf.mxu0
        %v2148 = vadd.f32 0.0, %v2147
        %2149 = vmatmul.bf16.gmra.mxu0 %v2064
        %v2150 = vpop.f32.mrf.mxu0
        %v2151 = vadd.f32 0.0, %v2150
        %v2152 = vpop.f32.mrf.mxu0
        %v2153 = vadd.f32 0.0, %v2152
        %2154 = vmatmul.bf16.gmra.mxu0 %v2067
        %v2155 = vpop.f32.mrf.mxu0
        %v2156 = vadd.f32 0.0, %v2155
        %v2157 = vpop.f32.mrf.mxu0
        %v2158 = vadd.f32 0.0, %v2157
        %2159 = vmatmul.bf16.gmra.mxu0 %v2070
        %v2160 = vpop.f32.mrf.mxu0
        %v2161 = vadd.f32 0.0, %v2160
        %v2162 = vpop.f32.mrf.mxu0
        %v2163 = vadd.f32 0.0, %v2162
        %2164 = vdwg.mxu0
        %v2167 = vunpack.c.l.b16 %v2012
        %v2168 = vunpack.c.l.b16 %v2013
        %v2169 = vpack.c.b16 %v2168, %v2167
        %v2171 = vsel %vm2023, %v1996, 0
        %v2174 = vsel %vm2072, %v2169, 0
        %2176 = vmatpush.bf16.msra.mxu0 0
        %2177 = vmatpush.bf16.msra.mxu0 0
        %2178 = vmatpush.bf16.msra.mxu0 0
        %2179 = vmatpush.bf16.msra.mxu0 0
        %2180 = vmatpush.bf16.msra.mxu0 0
        %2181 = vmatpush.bf16.msra.mxu0 0
        %2182 = vmatpush.bf16.msra.mxu0 0
        %2183 = vmatpush.bf16.msra.mxu0 %v2174
        %2184 = vmatmul.bf16.gmra.mxu0 %v2171
        %v2185 = vpop.f32.mrf.mxu0
        %v2186 = vadd.f32 %v2086, %v2185
        %v2187 = vpop.f32.mrf.mxu0
        %v2188 = vadd.f32 %v2088, %v2187
        %2189 = vmatmul.bf16.gmra.mxu0 %v2025
        %v2190 = vpop.f32.mrf.mxu0
        %v2191 = vadd.f32 %v2091, %v2190
        %v2192 = vpop.f32.mrf.mxu0
        %v2193 = vadd.f32 %v2093, %v2192
        %2194 = vmatmul.bf16.gmra.mxu0 %v2028
        %v2195 = vpop.f32.mrf.mxu0
        %v2196 = vadd.f32 %v2096, %v2195
        %v2197 = vpop.f32.mrf.mxu0
        %v2198 = vadd.f32 %v2098, %v2197
        %2199 = vmatmul.bf16.gmra.mxu0 %v2031
        %v2200 = vpop.f32.mrf.mxu0
        %v2201 = vadd.f32 %v2101, %v2200
        %v2202 = vpop.f32.mrf.mxu0
        %v2203 = vadd.f32 %v2103, %v2202
        %2204 = vmatmul.bf16.gmra.mxu0 %v2034
        %v2205 = vpop.f32.mrf.mxu0
        %v2206 = vadd.f32 %v2106, %v2205
        %v2207 = vpop.f32.mrf.mxu0
        %v2208 = vadd.f32 %v2108, %v2207
        %2209 = vmatmul.bf16.gmra.mxu0 %v2037
        %v2210 = vpop.f32.mrf.mxu0
        %v2211 = vadd.f32 %v2111, %v2210
        %v2212 = vpop.f32.mrf.mxu0
        %v2213 = vadd.f32 %v2113, %v2212
        %2214 = vmatmul.bf16.gmra.mxu0 %v2040
        %v2215 = vpop.f32.mrf.mxu0
        %v2216 = vadd.f32 %v2116, %v2215
        %v2217 = vpop.f32.mrf.mxu0
        %v2218 = vadd.f32 %v2118, %v2217
        %2219 = vmatmul.bf16.gmra.mxu0 %v2043
        %v2220 = vpop.f32.mrf.mxu0
        %v2221 = vadd.f32 %v2121, %v2220
        %v2222 = vpop.f32.mrf.mxu0
        %v2223 = vadd.f32 %v2123, %v2222
        %2224 = vmatmul.bf16.gmra.mxu0 %v2046
        %v2225 = vpop.f32.mrf.mxu0
        %v2226 = vadd.f32 %v2126, %v2225
        %v2227 = vpop.f32.mrf.mxu0
        %v2228 = vadd.f32 %v2128, %v2227
        %2229 = vmatmul.bf16.gmra.mxu0 %v2049
        %v2230 = vpop.f32.mrf.mxu0
        %v2231 = vadd.f32 %v2131, %v2230
        %v2232 = vpop.f32.mrf.mxu0
        %v2233 = vadd.f32 %v2133, %v2232
        %2234 = vmatmul.bf16.gmra.mxu0 %v2052
        %v2235 = vpop.f32.mrf.mxu0
        %v2236 = vadd.f32 %v2136, %v2235
        %v2237 = vpop.f32.mrf.mxu0
        %v2238 = vadd.f32 %v2138, %v2237
        %2239 = vmatmul.bf16.gmra.mxu0 %v2055
        %v2240 = vpop.f32.mrf.mxu0
        %v2241 = vadd.f32 %v2141, %v2240
        %v2242 = vpop.f32.mrf.mxu0
        %v2243 = vadd.f32 %v2143, %v2242
        %2244 = vmatmul.bf16.gmra.mxu0 %v2058
        %v2245 = vpop.f32.mrf.mxu0
        %v2246 = vadd.f32 %v2146, %v2245
        %v2247 = vpop.f32.mrf.mxu0
        %v2248 = vadd.f32 %v2148, %v2247
        %2249 = vmatmul.bf16.gmra.mxu0 %v2061
        %v2250 = vpop.f32.mrf.mxu0
        %v2251 = vadd.f32 %v2151, %v2250
        %v2252 = vpop.f32.mrf.mxu0
        %v2253 = vadd.f32 %v2153, %v2252
        %2254 = vmatmul.bf16.gmra.mxu0 %v2064
        %v2255 = vpop.f32.mrf.mxu0
        %v2256 = vadd.f32 %v2156, %v2255
        %v2257 = vpop.f32.mrf.mxu0
        %v2258 = vadd.f32 %v2158, %v2257
        %2259 = vmatmul.bf16.gmra.mxu0 %v2067
        %v2260 = vpop.f32.mrf.mxu0
        %v2261 = vadd.f32 %v2161, %v2260
        %v2262 = vpop.f32.mrf.mxu0
        %v2263 = vadd.f32 %v2163, %v2262
        %2264 = vdwg.mxu0
        %v2265 = vpack.c.bf16 %v1995, %v1994
        %s2266 = scalar_lea.vmem %s4, 16
        %v2267 = vld [vmem:[%s2266] sm:$0xf]
        %v2268 = vld [vmem:[%s2266 + $0x4] sm:$0x3]
        %v2271 = vunpack.c.l.b16 %v2267
        %v2272 = vunpack.c.l.b16 %v2268
        %v2273 = vpack.c.b16 %v2272, %v2271
        %v2275 = vsel %vm2023, %v2265, 0
        %v2278 = vsel %vm2072, %v2273, 0
        %2280 = vmatpush.bf16.msra.mxu0 0
        %2281 = vmatpush.bf16.msra.mxu0 0
        %2282 = vmatpush.bf16.msra.mxu0 0
        %2283 = vmatpush.bf16.msra.mxu0 0
        %2284 = vmatpush.bf16.msra.mxu0 0
        %2285 = vmatpush.bf16.msra.mxu0 0
        %2286 = vmatpush.bf16.msra.mxu0 0
        %2287 = vmatpush.bf16.msra.mxu0 %v2278
        %2288 = vmatmul.bf16.gmra.mxu0 %v2028
        %v2289 = vpop.f32.mrf.mxu0
        %v2290 = vadd.f32 0.0, %v2289
        %v2291 = vpop.f32.mrf.mxu0
        %v2292 = vadd.f32 0.0, %v2291
        %2293 = vmatmul.bf16.gmra.mxu0 %v2031
        %v2294 = vpop.f32.mrf.mxu0
        %v2295 = vadd.f32 0.0, %v2294
        %v2296 = vpop.f32.mrf.mxu0
        %v2297 = vadd.f32 0.0, %v2296
        %2298 = vmatmul.bf16.gmra.mxu0 %v2034
        %v2299 = vpop.f32.mrf.mxu0
        %v2300 = vadd.f32 0.0, %v2299
        %v2301 = vpop.f32.mrf.mxu0
        %v2302 = vadd.f32 0.0, %v2301
        %2303 = vmatmul.bf16.gmra.mxu0 %v2037
        %v2304 = vpop.f32.mrf.mxu0
        %v2305 = vadd.f32 0.0, %v2304
        %v2306 = vpop.f32.mrf.mxu0
        %v2307 = vadd.f32 0.0, %v2306
        %2308 = vmatmul.bf16.gmra.mxu0 %v2040
        %v2309 = vpop.f32.mrf.mxu0
        %v2310 = vadd.f32 0.0, %v2309
        %v2311 = vpop.f32.mrf.mxu0
        %v2312 = vadd.f32 0.0, %v2311
        %2313 = vmatmul.bf16.gmra.mxu0 %v2043
        %v2314 = vpop.f32.mrf.mxu0
        %v2315 = vadd.f32 0.0, %v2314
        %v2316 = vpop.f32.mrf.mxu0
        %v2317 = vadd.f32 0.0, %v2316
        %2318 = vmatmul.bf16.gmra.mxu0 %v2046
        %v2319 = vpop.f32.mrf.mxu0
        %v2320 = vadd.f32 0.0, %v2319
        %v2321 = vpop.f32.mrf.mxu0
        %v2322 = vadd.f32 0.0, %v2321
        %2323 = vmatmul.bf16.gmra.mxu0 %v2049
        %v2324 = vpop.f32.mrf.mxu0
        %v2325 = vadd.f32 0.0, %v2324
        %v2326 = vpop.f32.mrf.mxu0
        %v2327 = vadd.f32 0.0, %v2326
        %2328 = vmatmul.bf16.gmra.mxu0 %v2052
        %v2329 = vpop.f32.mrf.mxu0
        %v2330 = vadd.f32 0.0, %v2329
        %v2331 = vpop.f32.mrf.mxu0
        %v2332 = vadd.f32 0.0, %v2331
        %2333 = vmatmul.bf16.gmra.mxu0 %v2055
        %v2334 = vpop.f32.mrf.mxu0
        %v2335 = vadd.f32 0.0, %v2334
        %v2336 = vpop.f32.mrf.mxu0
        %v2337 = vadd.f32 0.0, %v2336
        %2338 = vmatmul.bf16.gmra.mxu0 %v2058
        %v2339 = vpop.f32.mrf.mxu0
        %v2340 = vadd.f32 0.0, %v2339
        %v2341 = vpop.f32.mrf.mxu0
        %v2342 = vadd.f32 0.0, %v2341
        %2343 = vmatmul.bf16.gmra.mxu0 %v2061
        %v2344 = vpop.f32.mrf.mxu0
        %v2345 = vadd.f32 0.0, %v2344
        %v2346 = vpop.f32.mrf.mxu0
        %v2347 = vadd.f32 0.0, %v2346
        %2348 = vmatmul.bf16.gmra.mxu0 %v2064
        %v2349 = vpop.f32.mrf.mxu0
        %v2350 = vadd.f32 0.0, %v2349
        %v2351 = vpop.f32.mrf.mxu0
        %v2352 = vadd.f32 0.0, %v2351
        %2353 = vmatmul.bf16.gmra.mxu0 %v2067
        %v2354 = vpop.f32.mrf.mxu0
        %v2355 = vadd.f32 0.0, %v2354
        %v2356 = vpop.f32.mrf.mxu0
        %v2357 = vadd.f32 0.0, %v2356
        %2358 = vmatmul.bf16.gmra.mxu0 %v2070
        %v2359 = vpop.f32.mrf.mxu0
        %v2360 = vadd.f32 0.0, %v2359
        %v2361 = vpop.f32.mrf.mxu0
        %v2362 = vadd.f32 0.0, %v2361
        %2363 = vmatmul.bf16.gmra.mxu0 %v2275
        %v2364 = vpop.f32.mrf.mxu0
        %v2365 = vadd.f32 0.0, %v2364
        %v2366 = vpop.f32.mrf.mxu0
        %v2367 = vadd.f32 0.0, %v2366
        %2368 = vdwg.mxu0
        %v2369 = vadd.f32 %v2186, %v2290
        %v2370 = vadd.f32 %v2188, %v2292
        %v2371 = vadd.f32 %v2191, %v2295
        %v2372 = vadd.f32 %v2193, %v2297
        %v2373 = vadd.f32 %v2196, %v2300
        %v2374 = vadd.f32 %v2198, %v2302
        %v2375 = vadd.f32 %v2201, %v2305
        %v2376 = vadd.f32 %v2203, %v2307
        %v2377 = vadd.f32 %v2206, %v2310
        %v2378 = vadd.f32 %v2208, %v2312
        %v2379 = vadd.f32 %v2211, %v2315
        %v2380 = vadd.f32 %v2213, %v2317
        %v2381 = vadd.f32 %v2216, %v2320
        %v2382 = vadd.f32 %v2218, %v2322
        %v2383 = vadd.f32 %v2221, %v2325
        %v2384 = vadd.f32 %v2223, %v2327
        %v2385 = vadd.f32 %v2226, %v2330
        %v2386 = vadd.f32 %v2228, %v2332
        %v2387 = vadd.f32 %v2231, %v2335
        %v2388 = vadd.f32 %v2233, %v2337
        %v2389 = vadd.f32 %v2236, %v2340
        %v2390 = vadd.f32 %v2238, %v2342
        %v2391 = vadd.f32 %v2241, %v2345
        %v2392 = vadd.f32 %v2243, %v2347
        %v2393 = vadd.f32 %v2246, %v2350
        %v2394 = vadd.f32 %v2248, %v2352
        %v2395 = vadd.f32 %v2251, %v2355
        %v2396 = vadd.f32 %v2253, %v2357
        %v2397 = vadd.f32 %v2256, %v2360
        %v2398 = vadd.f32 %v2258, %v2362
        %v2399 = vadd.f32 %v2261, %v2365
        %v2400 = vadd.f32 %v2263, %v2367
        %v2401 = vld [vmem:[%s5] sm:$0x1]
        %v2403 = vperm.slane %v2401, 0
        %v2405 = vadd.f32 %v2369, %v2403
        %v2406 = vadd.f32 %v2370, %v2403
        %v2407 = vadd.f32 %v2371, %v2403
        %v2408 = vadd.f32 %v2372, %v2403
        %v2409 = vadd.f32 %v2373, %v2403
        %v2410 = vadd.f32 %v2374, %v2403
        %v2411 = vadd.f32 %v2375, %v2403
        %v2412 = vadd.f32 %v2376, %v2403
        %v2413 = vadd.f32 %v2377, %v2403
        %v2414 = vadd.f32 %v2378, %v2403
        %v2415 = vadd.f32 %v2379, %v2403
        %v2416 = vadd.f32 %v2380, %v2403
        %v2417 = vadd.f32 %v2381, %v2403
        %v2418 = vadd.f32 %v2382, %v2403
        %v2419 = vadd.f32 %v2383, %v2403
        %v2420 = vadd.f32 %v2384, %v2403
        %v2421 = vadd.f32 %v2385, %v2403
        %v2422 = vadd.f32 %v2386, %v2403
        %v2423 = vadd.f32 %v2387, %v2403
        %v2424 = vadd.f32 %v2388, %v2403
        %v2425 = vadd.f32 %v2389, %v2403
        %v2426 = vadd.f32 %v2390, %v2403
        %v2427 = vadd.f32 %v2391, %v2403
        %v2428 = vadd.f32 %v2392, %v2403
        %v2429 = vadd.f32 %v2393, %v2403
        %v2430 = vadd.f32 %v2394, %v2403
        %v2431 = vadd.f32 %v2395, %v2403
        %v2432 = vadd.f32 %v2396, %v2403
        %v2433 = vadd.f32 %v2397, %v2403
        %v2434 = vadd.f32 %v2398, %v2403
        %v2435 = vadd.f32 %v2399, %v2403
        %v2436 = vadd.f32 %v2400, %v2403
        %v2437 = vmax.f32 %v2405, 0.0
        %v2438 = vmax.f32 %v2406, 0.0
        %v2439 = vmax.f32 %v2407, 0.0
        %v2440 = vmax.f32 %v2408, 0.0
        %v2441 = vmax.f32 %v2409, 0.0
        %v2442 = vmax.f32 %v2410, 0.0
        %v2443 = vmax.f32 %v2411, 0.0
        %v2444 = vmax.f32 %v2412, 0.0
        %v2445 = vmax.f32 %v2413, 0.0
        %v2446 = vmax.f32 %v2414, 0.0
        %v2447 = vmax.f32 %v2415, 0.0
        %v2448 = vmax.f32 %v2416, 0.0
        %v2449 = vmax.f32 %v2417, 0.0
        %v2450 = vmax.f32 %v2418, 0.0
        %v2451 = vmax.f32 %v2419, 0.0
        %v2452 = vmax.f32 %v2420, 0.0
        %v2453 = vmax.f32 %v2421, 0.0
        %v2454 = vmax.f32 %v2422, 0.0
        %v2455 = vmax.f32 %v2423, 0.0
        %v2456 = vmax.f32 %v2424, 0.0
        %v2457 = vmax.f32 %v2425, 0.0
        %v2458 = vmax.f32 %v2426, 0.0
        %v2459 = vmax.f32 %v2427, 0.0
        %v2460 = vmax.f32 %v2428, 0.0
        %v2461 = vmax.f32 %v2429, 0.0
        %v2462 = vmax.f32 %v2430, 0.0
        %v2463 = vmax.f32 %v2431, 0.0
        %v2464 = vmax.f32 %v2432, 0.0
        %v2465 = vmax.f32 %v2433, 0.0
        %v2466 = vmax.f32 %v2434, 0.0
        %v2467 = vmax.f32 %v2435, 0.0
        %v2468 = vmax.f32 %v2436, 0.0
        %v2469 = vpack.c.bf16 %v2438, %v2437
        %v2470 = vpack.c.bf16 %v2440, %v2439
        %v2471 = vpack.c.bf16 %v2442, %v2441
        %v2472 = vpack.c.bf16 %v2444, %v2443
        %v2473 = vpack.c.bf16 %v2446, %v2445
        %v2474 = vpack.c.bf16 %v2448, %v2447
        %v2475 = vpack.c.bf16 %v2450, %v2449
        %v2476 = vpack.c.bf16 %v2452, %v2451
        %v2477 = vpack.c.bf16 %v2454, %v2453
        %v2478 = vpack.c.bf16 %v2456, %v2455
        %v2479 = vpack.c.bf16 %v2458, %v2457
        %v2480 = vpack.c.bf16 %v2460, %v2459
        %v2481 = vpack.c.bf16 %v2462, %v2461
        %v2482 = vpack.c.bf16 %v2464, %v2463
        %v2483 = vpack.c.bf16 %v2466, %v2465
        %v2484 = vpack.c.bf16 %v2468, %v2467
        %v2485 = vld [vmem:[%s6] sm:$0x3]
        %v2486 = vld [vmem:[%s7] sm:$0x1]
        %v2488 = vperm.slane %v2486, 0
        %v2491 = vsel %vm1922, %v2469, 0
        %v2494 = vsel %vm1922, %v2470, 0
        %v2497 = vsel %vm1922, %v2471, 0
        %v2500 = vsel %vm1922, %v2472, 0
        %v2503 = vsel %vm1922, %v2473, 0
        %v2506 = vsel %vm1922, %v2474, 0
        %v2509 = vsel %vm1922, %v2475, 0
        %v2512 = vsel %vm1922, %v2476, 0
        %v2515 = vsel %vm1922, %v2477, 0
        %v2518 = vsel %vm1922, %v2478, 0
        %v2521 = vsel %vm1922, %v2479, 0
        %v2524 = vsel %vm1922, %v2480, 0
        %v2527 = vsel %vm1922, %v2481, 0
        %v2530 = vsel %vm1922, %v2482, 0
        %v2533 = vsel %vm1922, %v2483, 0
        %v2536 = vsel %vm1922, %v2484, 0
        %vm2538 = vcmask 1041408
        %v2540 = vsel %vm2538, %v2485, 0
        %2542 = vmatpush.bf16.msra.mxu0 0
        %2543 = vmatpush.bf16.msra.mxu0 0
        %2544 = vmatpush.bf16.msra.mxu0 0
        %2545 = vmatpush.bf16.msra.mxu0 0
        %2546 = vmatpush.bf16.msra.mxu0 0
        %2547 = vmatpush.bf16.msra.mxu0 0
        %2548 = vmatpush.bf16.msra.mxu0 0
        %2549 = vmatpush.bf16.msra.mxu0 %v2540
        %2550 = vmatmul.bf16.gmra.mxu0 %v2491
        %v2551 = vpop.f32.mrf.mxu0
        %v2552 = vadd.f32 %v2488, %v2551
        %v2553 = vpop.f32.mrf.mxu0
        %v2554 = vadd.f32 %v2488, %v2553
        %2555 = vmatmul.bf16.gmra.mxu0 %v2494
        %v2556 = vpop.f32.mrf.mxu0
        %v2557 = vadd.f32 %v2488, %v2556
        %v2558 = vpop.f32.mrf.mxu0
        %v2559 = vadd.f32 %v2488, %v2558
        %2560 = vmatmul.bf16.gmra.mxu0 %v2497
        %v2561 = vpop.f32.mrf.mxu0
        %v2562 = vadd.f32 %v2488, %v2561
        %v2563 = vpop.f32.mrf.mxu0
        %v2564 = vadd.f32 %v2488, %v2563
        %2565 = vmatmul.bf16.gmra.mxu0 %v2500
        %v2566 = vpop.f32.mrf.mxu0
        %v2567 = vadd.f32 %v2488, %v2566
        %v2568 = vpop.f32.mrf.mxu0
        %v2569 = vadd.f32 %v2488, %v2568
        %2570 = vmatmul.bf16.gmra.mxu0 %v2503
        %v2571 = vpop.f32.mrf.mxu0
        %v2572 = vadd.f32 %v2488, %v2571
        %v2573 = vpop.f32.mrf.mxu0
        %v2574 = vadd.f32 %v2488, %v2573
        %2575 = vmatmul.bf16.gmra.mxu0 %v2506
        %v2576 = vpop.f32.mrf.mxu0
        %v2577 = vadd.f32 %v2488, %v2576
        %v2578 = vpop.f32.mrf.mxu0
        %v2579 = vadd.f32 %v2488, %v2578
        %2580 = vmatmul.bf16.gmra.mxu0 %v2509
        %v2581 = vpop.f32.mrf.mxu0
        %v2582 = vadd.f32 %v2488, %v2581
        %v2583 = vpop.f32.mrf.mxu0
        %v2584 = vadd.f32 %v2488, %v2583
        %2585 = vmatmul.bf16.gmra.mxu0 %v2512
        %v2586 = vpop.f32.mrf.mxu0
        %v2587 = vadd.f32 %v2488, %v2586
        %v2588 = vpop.f32.mrf.mxu0
        %v2589 = vadd.f32 %v2488, %v2588
        %2590 = vmatmul.bf16.gmra.mxu0 %v2515
        %v2591 = vpop.f32.mrf.mxu0
        %v2592 = vadd.f32 %v2488, %v2591
        %v2593 = vpop.f32.mrf.mxu0
        %v2594 = vadd.f32 %v2488, %v2593
        %2595 = vmatmul.bf16.gmra.mxu0 %v2518
        %v2596 = vpop.f32.mrf.mxu0
        %v2597 = vadd.f32 %v2488, %v2596
        %v2598 = vpop.f32.mrf.mxu0
        %v2599 = vadd.f32 %v2488, %v2598
        %2600 = vmatmul.bf16.gmra.mxu0 %v2521
        %v2601 = vpop.f32.mrf.mxu0
        %v2602 = vadd.f32 %v2488, %v2601
        %v2603 = vpop.f32.mrf.mxu0
        %v2604 = vadd.f32 %v2488, %v2603
        %2605 = vmatmul.bf16.gmra.mxu0 %v2524
        %v2606 = vpop.f32.mrf.mxu0
        %v2607 = vadd.f32 %v2488, %v2606
        %v2608 = vpop.f32.mrf.mxu0
        %v2609 = vadd.f32 %v2488, %v2608
        %2610 = vmatmul.bf16.gmra.mxu0 %v2527
        %v2611 = vpop.f32.mrf.mxu0
        %v2612 = vadd.f32 %v2488, %v2611
        %v2613 = vpop.f32.mrf.mxu0
        %v2614 = vadd.f32 %v2488, %v2613
        %2615 = vmatmul.bf16.gmra.mxu0 %v2530
        %v2616 = vpop.f32.mrf.mxu0
        %v2617 = vadd.f32 %v2488, %v2616
        %v2618 = vpop.f32.mrf.mxu0
        %v2619 = vadd.f32 %v2488, %v2618
        %2620 = vmatmul.bf16.gmra.mxu0 %v2533
        %v2621 = vpop.f32.mrf.mxu0
        %v2622 = vadd.f32 %v2488, %v2621
        %v2623 = vpop.f32.mrf.mxu0
        %v2624 = vadd.f32 %v2488, %v2623
        %2625 = vmatmul.bf16.gmra.mxu0 %v2536
        %v2626 = vpop.f32.mrf.mxu0
        %v2627 = vadd.f32 %v2488, %v2626
        %v2628 = vpop.f32.mrf.mxu0
        %v2629 = vadd.f32 %v2488, %v2628
        %2630 = vdwg.mxu0
        %v2631 = vadd.f32 %v2552, %v385
        %v2632 = vadd.f32 %v2554, %v386
        %v2633 = vadd.f32 %v2557, %v387
        %v2634 = vadd.f32 %v2559, %v388
        %v2635 = vadd.f32 %v2562, %v389
        %v2636 = vadd.f32 %v2564, %v390
        %v2637 = vadd.f32 %v2567, %v391
        %v2638 = vadd.f32 %v2569, %v392
        %v2639 = vadd.f32 %v2572, %v393
        %v2640 = vadd.f32 %v2574, %v394
        %v2641 = vadd.f32 %v2577, %v395
        %v2642 = vadd.f32 %v2579, %v396
        %v2643 = vadd.f32 %v2582, %v397
        %v2644 = vadd.f32 %v2584, %v398
        %v2645 = vadd.f32 %v2587, %v399
        %v2646 = vadd.f32 %v2589, %v400
        %v2647 = vadd.f32 %v2592, %v401
        %v2648 = vadd.f32 %v2594, %v402
        %v2649 = vadd.f32 %v2597, %v403
        %v2650 = vadd.f32 %v2599, %v404
        %v2651 = vadd.f32 %v2602, %v405
        %v2652 = vadd.f32 %v2604, %v406
        %v2653 = vadd.f32 %v2607, %v407
        %v2654 = vadd.f32 %v2609, %v408
        %v2655 = vadd.f32 %v2612, %v409
        %v2656 = vadd.f32 %v2614, %v410
        %v2657 = vadd.f32 %v2617, %v411
        %v2658 = vadd.f32 %v2619, %v412
        %v2659 = vadd.f32 %v2622, %v413
        %v2660 = vadd.f32 %v2624, %v414
        %v2661 = vadd.f32 %v2627, %v415
        %v2662 = vadd.f32 %v2629, %v416
        %v2663 = vmax.f32 %v2631, 0.0
        %v2664 = vmax.f32 %v2632, 0.0
        %v2665 = vmax.f32 %v2633, 0.0
        %v2666 = vmax.f32 %v2634, 0.0
        %v2667 = vmax.f32 %v2635, 0.0
        %v2668 = vmax.f32 %v2636, 0.0
        %v2669 = vmax.f32 %v2637, 0.0
        %v2670 = vmax.f32 %v2638, 0.0
        %v2671 = vmax.f32 %v2639, 0.0
        %v2672 = vmax.f32 %v2640, 0.0
        %v2673 = vmax.f32 %v2641, 0.0
        %v2674 = vmax.f32 %v2642, 0.0
        %v2675 = vmax.f32 %v2643, 0.0
        %v2676 = vmax.f32 %v2644, 0.0
        %v2677 = vmax.f32 %v2645, 0.0
        %v2678 = vmax.f32 %v2646, 0.0
        %v2679 = vmax.f32 %v2647, 0.0
        %v2680 = vmax.f32 %v2648, 0.0
        %v2681 = vmax.f32 %v2649, 0.0
        %v2682 = vmax.f32 %v2650, 0.0
        %v2683 = vmax.f32 %v2651, 0.0
        %v2684 = vmax.f32 %v2652, 0.0
        %v2685 = vmax.f32 %v2653, 0.0
        %v2686 = vmax.f32 %v2654, 0.0
        %v2687 = vmax.f32 %v2655, 0.0
        %v2688 = vmax.f32 %v2656, 0.0
        %v2689 = vmax.f32 %v2657, 0.0
        %v2690 = vmax.f32 %v2658, 0.0
        %v2691 = vmax.f32 %v2659, 0.0
        %v2692 = vmax.f32 %v2660, 0.0
        %v2693 = vmax.f32 %v2661, 0.0
        %v2694 = vmax.f32 %v2662, 0.0
        %2695 = vst.msk [vmem:[%s369] sm:$0xff] %vm442, %v2663
        %2696 = vst.msk [vmem:[%s369 + $0x8] sm:$0xff] %vm442, %v2664
        %2697 = vst.msk [vmem:[%s369 + $0x10] sm:$0xff] %vm442, %v2665
        %2698 = vst.msk [vmem:[%s369 + $0x18] sm:$0xff] %vm442, %v2666
        %2699 = vst.msk [vmem:[%s369 + $0x20] sm:$0xff] %vm442, %v2667
        %2700 = vst.msk [vmem:[%s369 + $0x28] sm:$0xff] %vm442, %v2668
        %2701 = vst.msk [vmem:[%s369 + $0x30] sm:$0xff] %vm442, %v2669
        %2702 = vst.msk [vmem:[%s369 + $0x38] sm:$0xff] %vm442, %v2670
        %2703 = vst.msk [vmem:[%s369 + $0x40] sm:$0xff] %vm442, %v2671
        %2704 = vst.msk [vmem:[%s369 + $0x48] sm:$0xff] %vm442, %v2672
        %2705 = vst.msk [vmem:[%s369 + $0x50] sm:$0xff] %vm442, %v2673
        %2706 = vst.msk [vmem:[%s369 + $0x58] sm:$0xff] %vm442, %v2674
        %2707 = vst.msk [vmem:[%s369 + $0x60] sm:$0xff] %vm442, %v2675
        %2708 = vst.msk [vmem:[%s369 + $0x68] sm:$0xff] %vm442, %v2676
        %2709 = vst.msk [vmem:[%s369 + $0x70] sm:$0xff] %vm442, %v2677
        %2710 = vst.msk [vmem:[%s369 + $0x78] sm:$0xff] %vm442, %v2678
        %2711 = vst.msk [vmem:[%s369 + $0x80] sm:$0xff] %vm442, %v2679
        %2712 = vst.msk [vmem:[%s369 + $0x88] sm:$0xff] %vm442, %v2680
        %2713 = vst.msk [vmem:[%s369 + $0x90] sm:$0xff] %vm442, %v2681
        %2714 = vst.msk [vmem:[%s369 + $0x98] sm:$0xff] %vm442, %v2682
        %2715 = vst.msk [vmem:[%s369 + $0xa0] sm:$0xff] %vm442, %v2683
        %2716 = vst.msk [vmem:[%s369 + $0xa8] sm:$0xff] %vm442, %v2684
        %2717 = vst.msk [vmem:[%s369 + $0xb0] sm:$0xff] %vm442, %v2685
        %2718 = vst.msk [vmem:[%s369 + $0xb8] sm:$0xff] %vm442, %v2686
        %2719 = vst.msk [vmem:[%s369 + $0xc0] sm:$0xff] %vm442, %v2687
        %2720 = vst.msk [vmem:[%s369 + $0xc8] sm:$0xff] %vm442, %v2688
        %2721 = vst.msk [vmem:[%s369 + $0xd0] sm:$0xff] %vm442, %v2689
        %2722 = vst.msk [vmem:[%s369 + $0xd8] sm:$0xff] %vm442, %v2690
        %2723 = vst.msk [vmem:[%s369 + $0xe0] sm:$0xff] %vm442, %v2691
        %2724 = vst.msk [vmem:[%s369 + $0xe8] sm:$0xff] %vm442, %v2692
        %2725 = vst.msk [vmem:[%s369 + $0xf0] sm:$0xff] %vm442, %v2693
        %2726 = vst.msk [vmem:[%s369 + $0xf8] sm:$0xff] %vm442, %v2694
        %s2727 = sand.u32 %s229, 1
        %s2728 = scalar_lea.sflag [#allocation4], %s2727
        %s2729 = sand.u32 %s229, 1
        %s2730 = smul.addr %s2729, 256
        %s2731 = scalar_lea.vmem [#allocation5], %s2730
        // Predicated region
        $region57: #{tpu_custom_call.1} parent=51 // pred_check
          %p2732 = pneg %p239
        $region58: #{tpu_custom_call.1} parent=51 // pred_check_branch
          %2734 = sbr.rel (%p2732) target = $region60
        $region59: #{tpu_custom_call.1} parent=51 // pred_region
          %s2735 = smul.u32 16, %s30
          %2737 = vsyncadd %s2728, 0
          %s2738 = smul.addr %s2735, 2
          %s2739 = smul.addr %s29, 32
          %s2740 = sadd.s32 %s2738, %s2739
          %s2741 = smul.addr %s2740, 8
          %s2742 = scalar_lea.hbm %s8, %s2741
          %s2743 = sshll.u32 %s2731, 4
          %s2744 = int_to_ptr.vmem [resolvable:$true] %s2743
          %s2745 = sshll.u32 %s2742, 4
          %s2746 = int_to_ptr.hbm [resolvable:$true] %s2745
          %2751 = dma.vmem_to_hbm [thread:$0]  %s2744, 4096, %s2746, %s2728, 128, 128, 8
        $region60: #{tpu_custom_call.1} parent=51 // pred_fallthru
          _
      $region52: #{tpu_custom_call.1} parent=5 // pred_fallthru
        _
      %p2752 = scmp.le.s32.totalorder 2, %s20
      // Predicated region
      $region61: #{tpu_custom_call.1} parent=5 // pred_check
        %p2753 = pneg %p2752
      $region62: #{tpu_custom_call.1} parent=5 // pred_check_branch
        %2755 = sbr.rel (%p2753) target = $region64
      $region63: #{tpu_custom_call.1} parent=5 // pred_region
        %s2756 = ssub.s32 %s20, 2
        // Predicated region
        $region65: #{tpu_custom_call.1} parent=63 // pred_check
          %p2757 = pneg %p245
        $region66: #{tpu_custom_call.1} parent=63 // pred_check_branch
          %2759 = sbr.rel (%p2757) target = $region68
        $region67: #{tpu_custom_call.1} parent=63 // pred_region
          %s2760 = sand.u32 %s230, 1
          %s2761 = scalar_lea.sflag [#allocation4], %s2760
          %s2762 = sand.u32 %s230, 1
          %s2763 = smul.addr %s2762, 256
          %s2764 = scalar_lea.vmem [#allocation5], %s2763
          %2766 = dma.done %s2761, 4096
        $region68: #{tpu_custom_call.1} parent=63 // pred_fallthru
          _
      $region64: #{tpu_custom_call.1} parent=5 // pred_fallthru
        _
    $region6: #{tpu_custom_call.1} parent=1 // loop_footer
      %s24 = sadd.s32 1, %s20
    $region7: #{tpu_custom_call.1} parent=1 // loop_footer_branch
      %19 = sbr.rel target = $region3
    $region8: #{tpu_custom_call.1} parent=1 // loop_exit
      _
    %2767 = vsyncpa [#allocation3], 1
    %s2768 = scalar_lea.sflag [#allocation3], 1
    %2769 = vsyncpa %s2768, 1
    %2770 = vsyncpa [#allocation4], 1
    %s2771 = scalar_lea.sflag [#allocation4], 1
    %2772 = vsyncpa %s2771, 1

</llo_original>
